<compile_context>
chip_gen: v7x
topology: tpu7x:2x2x1
jax: 0.10.0
libtpu: 0.0.40
codegen_flags: <defaults>
</compile_context>

<pallas_src>
import functools

import jax
import jax.numpy as jnp
from jax import lax
from jax.experimental import pallas as pl
from jax.experimental.pallas import tpu as pltpu
import numpy as np


def _spatial_attention_kernel(w_ref, x_ref, o_ref, *, W, K, HW):
    # w_ref : SMEM, flat (2*K*K,) float32, OIHW order with out=0 -> [in, ky, kx]
    # x_ref / o_ref : VMEM, (Bt, C, HWp) lane-dense slab (HWp = HW padded to 128)
    Bt, C, HWp = x_ref.shape
    KK = K * K
    pad = (K - 1) // 2
    ext = pad * W + pad              # flat-space zero pad on each side
    win = HW + 2 * pad * W           # length of one hoisted kx-shifted window

    xs = x_ref[...]                                              # (Bt, C, HWp)

    # ---- channel mean (f32 accumulation) / channel max, lane-dense ----------
    avg = jnp.sum(xs.astype(jnp.float32), axis=1) * (1.0 / C)    # (Bt, HWp) f32
    mx = jnp.max(xs, axis=1).astype(jnp.float32)                 # (Bt, HWp) f32
    if HWp != HW:                    # drop lane padding before the flat conv
        avg = avg[:, :HW]
        mx = mx[:, :HW]

    # ---- KxK conv of concat([avg, max]) in flat row-major space -------------
    # avg/max maps of every batch in the block are packed along sublanes so the
    # padding, masks, shifted windows and MACs are shared between both paths.
    m = jnp.concatenate([avg, mx], axis=0)                       # (2Bt, HW)
    m_p = jnp.pad(m, ((0, 0), (ext, ext)))                       # (2Bt, HW+2ext)

    # Hoisted kx-shifted + column-boundary-masked windows (K total).
    col = lax.broadcasted_iota(jnp.int32, (2 * Bt, win), 1) % W
    sh = []
    for kx in range(K):
        dx = kx - pad
        mask = jnp.logical_and(col + dx >= 0, col + dx < W)
        sh.append(jnp.where(mask, m_p[:, kx:kx + win], 0.0))

    # Per-tap weight column: rows [0, Bt) use the avg-path weight, rows
    # [Bt, 2Bt) the max-path weight (built from two SMEM scalars).
    row_is_avg = lax.broadcasted_iota(jnp.int32, (2 * Bt, 1), 0) < Bt

    # Two-stage factorization: accumulate over kx on the full window, then one
    # ky*W-offset slice per ky (K unaligned lane slices instead of K*K).
    conv = jnp.zeros((2 * Bt, HW), jnp.float32)
    for ky in range(K):
        acc0 = jnp.zeros((2 * Bt, win), jnp.float32)
        acc1 = jnp.zeros((2 * Bt, win), jnp.float32)
        for kx in range(K):
            wc = jnp.where(row_is_avg, w_ref[ky * K + kx],
                           w_ref[KK + ky * K + kx])               # (2Bt, 1)
            if kx & 1:                                            # split dep chain
                acc1 = acc1 + wc * sh[kx]
            else:
                acc0 = acc0 + wc * sh[kx]
        base = ky * W
        conv = conv + (acc0 + acc1)[:, base:base + HW]

    attn = jax.nn.sigmoid(conv[:Bt] + conv[Bt:])                  # (Bt, HW) f32
    if HWp != HW:                    # restore lane padding for a dense store
        attn = jnp.pad(attn, ((0, 0), (0, HWp - HW)))

    # ---- gate: big multiply stays in the input dtype -------------------------
    o_ref[...] = xs * attn[:, None, :].astype(o_ref.dtype)


def spatial_attention(x, w):
    """x: (B, C, H, W); w: (1, 2, K, K) conv weight (OIHW, bias=False)."""
    B, C, H, W = x.shape
    k = w.shape[-1]
    assert w.shape == (1, 2, k, k) and k in (3, 7)
    HW = H * W
    HWp = ((HW + 127) // 128) * 128         # lane-dense store guard

    x_flat = x.reshape(B, C, HW)            # NCHW contiguous: free in HBM
    if HWp != HW:
        x_flat = jnp.pad(x_flat, ((0, 0), (0, 0), (0, HWp - HW)))
    w_flat = w.reshape(-1).astype(jnp.float32)      # (2*K*K,) [in][ky][kx]

    # VMEM budget clamped to the physical per-core VMEM (v7x has only 64 MiB).
    try:
        vmem_cap = int(pltpu.get_tpu_info().vmem_capacity_bytes)
    except Exception:
        vmem_cap = 64 * 1024 * 1024         # conservative fallback (v7x per-TC)
    vmem_budget = (vmem_cap * 3) // 4

    # Batch blocking: target ~1 MiB per grid step, keep >= 2 "parallel" steps
    # when B >= 2 (megacore on v7x), and stay well inside the VMEM budget
    # (in + out double-buffered plus conv temporaries ~ 6x the block).
    per_batch_bytes = C * HWp * x.dtype.itemsize
    Bt = 1
    for bt in range(1, B + 1):
        if B % bt:
            continue
        if 6 * bt * per_batch_bytes > vmem_budget:
            break
        if B >= 2 and (B // bt) < 2:
            break
        Bt = bt
        if bt * per_batch_bytes >= (1 << 20):
            break
    # TODO(synk): for per-batch slabs too large even at Bt=1 (6*C*HW*itemsize >
    # vmem_budget, relevant on v7x's 64 MiB VMEM) switch to a C-chunked
    # two-phase reduce-then-gate streaming pipeline.

    block_bytes = Bt * per_batch_bytes
    vmem_limit = int(min(vmem_budget, max(32 * 1024 * 1024, 6 * block_bytes)))

    kernel = functools.partial(_spatial_attention_kernel, W=W, K=k, HW=HW)
    out_flat = pl.pallas_call(
        kernel,
        out_shape=jax.ShapeDtypeStruct((B, C, HWp), x.dtype),
        grid=(B // Bt,),
        in_specs=[
            pl.BlockSpec(memory_space=pltpu.MemorySpace.SMEM),      # conv weights
            pl.BlockSpec((Bt, C, HWp), lambda b: (b, 0, 0)),        # x slab
        ],
        out_specs=pl.BlockSpec((Bt, C, HWp), lambda b: (b, 0, 0)),
        compiler_params=pltpu.CompilerParams(
            dimension_semantics=("parallel",),
            vmem_limit_bytes=vmem_limit,
        ),
    )(w_flat, x_flat)

    if HWp != HW:
        out_flat = out_flat[..., :HW]
    return out_flat.reshape(B, C, H, W)


def reference(x, w):
    """Pure-JAX reference mirroring the PyTorch forward exactly."""
    k = w.shape[-1]
    pad = (k - 1) // 2
    avg = jnp.mean(x, axis=1, keepdims=True)
    mx = jnp.max(x, axis=1, keepdims=True)
    concat = jnp.concatenate([avg, mx], axis=1)
    attn = lax.conv_general_dilated(
        concat, w, window_strides=(1, 1),
        padding=((pad, pad), (pad, pad)),
        dimension_numbers=("NCHW", "OIHW", "NCHW"))
    return x * jax.nn.sigmoid(attn)


def _run_case(key, B, C, H, W, K):
    kx, kw = jax.random.split(key)
    x = jax.random.normal(kx, (B, C, H, W), dtype=jnp.float32)
    # Conv2d default init: U(-b, b), b = 1/sqrt(fan_in), fan_in = 2*K*K.
    bound = 1.0 / np.sqrt(2 * K * K)
    w = jax.random.uniform(kw, (1, 2, K, K), dtype=jnp.float32,
                           minval=-bound, maxval=bound)
    out = jax.block_until_ready(spatial_attention(x, w))
    ref = jax.block_until_ready(reference(x, w))
    np.testing.assert_allclose(np.asarray(out), np.asarray(ref),
                               rtol=1e-5, atol=1e-5)


if __name__ == "__main__":
    key = jax.random.PRNGKey(0)
    k1, k2, k3 = jax.random.split(key, 3)

    # Main case (module's intended small test shape): Bt=1, grid=(2,).
    _run_case(k1, B=2, C=4, H=16, W=16, K=7)
    # Batch-blocked path: Bt=4, grid=(2,) -> sublane-packed (8, HW) conv.
    _run_case(k2, B=8, C=4, H=16, W=16, K=7)
    # Lane-density guard path: H*W = 196 is padded to 256 inside the wrapper.
    _run_case(k3, B=2, C=3, H=14, W=14, K=7)

    print("KERNEL_OK")
</pallas_src>

<mosaic_0001>
module attributes {stable_mosaic.version = 11 : i64} {
  func.func @_spatial_attention_kernel(%arg0: i32, %arg1: memref<98xf32, #tpu.memory_space<smem>>, %arg2: memref<1x4x256xf32, #tpu.memory_space<vmem>>, %arg3: memref<1x4x256xf32, #tpu.memory_space<vmem>>) attributes {dimension_semantics = [#tpu.dimension_semantics<parallel>], iteration_bounds = array<i64: 2>, scalar_prefetch = 0 : i64, scratch_operands = 0 : i64, tpu.core_type = #tpu.core_type<tc>, window_params = [{transform_indices = @transform_0, window_bounds = array<i64: 98>}, {transform_indices = @transform_1, window_bounds = array<i64: 1, 4, 256>}, {transform_indices = @transform_2, window_bounds = array<i64: 1, 4, 256>}]} {
    %c0 = arith.constant 0 : index
    %c0_0 = arith.constant 0 : index
    %c0_1 = arith.constant 0 : index
    %0 = vector.load %arg2[%c0, %c0_0, %c0_1] : memref<1x4x256xf32, #tpu.memory_space<vmem>>, vector<1x4x256xf32>
    %cst = arith.constant dense<0.000000e+00> : vector<1x256xf32>
    %1 = vector.multi_reduction <add>, %0, %cst [1] : vector<1x4x256xf32> to vector<1x256xf32>
    %cst_2 = arith.constant 2.500000e-01 : f32
    %2 = vector.broadcast %cst_2 : f32 to vector<1x256xf32>
    %3 = arith.mulf %1, %2 : vector<1x256xf32>
    %cst_3 = arith.constant dense<0xFF800000> : vector<1x256xf32>
    %4 = vector.multi_reduction <maximumf>, %0, %cst_3 [1] : vector<1x4x256xf32> to vector<1x256xf32>
    %5 = tpu.concatenate %3, %4 in 0 : vector<1x256xf32>, vector<1x256xf32> -> vector<2x256xf32>
    %c0_i32 = arith.constant 0 : i32
    %6 = arith.sitofp %c0_i32 : i32 to f32
    %7 = vector.broadcast %6 : f32 to vector<2x51xf32>
    %8 = tpu.concatenate %7, %5 in 1 : vector<2x51xf32>, vector<2x256xf32> -> vector<2x307xf32>
    %9 = vector.broadcast %6 : f32 to vector<2x51xf32>
    %10 = tpu.concatenate %8, %9 in 1 : vector<2x307xf32>, vector<2x51xf32> -> vector<2x358xf32>
    %11 = tpu.iota {dimensions = array<i32: 1>} : vector<2x352xi32>
    %c16_i32 = arith.constant 16 : i32
    %c0_i32_4 = arith.constant 0 : i32
    %12 = arith.cmpi eq, %c16_i32, %c0_i32_4 : i32
    %c1_i32 = arith.constant 1 : i32
    %13 = arith.select %12, %c1_i32, %c16_i32 : i32
    %14 = vector.broadcast %13 : i32 to vector<2x352xi32>
    %15 = arith.remsi %11, %14 : vector<2x352xi32>
    %c0_i32_5 = arith.constant 0 : i32
    %16 = vector.broadcast %c0_i32_5 : i32 to vector<2x352xi32>
    %17 = arith.cmpi ne, %15, %16 : vector<2x352xi32>
    %c0_i32_6 = arith.constant 0 : i32
    %18 = vector.broadcast %c0_i32_6 : i32 to vector<2x352xi32>
    %19 = arith.cmpi slt, %15, %18 : vector<2x352xi32>
    %c0_i32_7 = arith.constant 0 : i32
    %20 = arith.cmpi slt, %13, %c0_i32_7 : i32
    %21 = vector.broadcast %20 : i1 to vector<2x352xi1>
    %22 = vector.broadcast %21 : vector<2x352xi1> to vector<2x352xi1>
    %23 = arith.xori %19, %22 : vector<2x352xi1>
    %24 = arith.andi %23, %17 : vector<2x352xi1>
    %25 = vector.broadcast %13 : i32 to vector<2x352xi32>
    %26 = arith.addi %15, %25 : vector<2x352xi32>
    %27 = arith.select %24, %26, %15 : vector<2x352xi1>, vector<2x352xi32>
    %c-3_i32 = arith.constant -3 : i32
    %28 = vector.broadcast %c-3_i32 : i32 to vector<2x352xi32>
    %29 = arith.addi %27, %28 : vector<2x352xi32>
    %c0_i32_8 = arith.constant 0 : i32
    %30 = vector.broadcast %c0_i32_8 : i32 to vector<2x352xi32>
    %31 = arith.cmpi sge, %29, %30 : vector<2x352xi32>
    %c-3_i32_9 = arith.constant -3 : i32
    %32 = vector.broadcast %c-3_i32_9 : i32 to vector<2x352xi32>
    %33 = arith.addi %27, %32 : vector<2x352xi32>
    %c16_i32_10 = arith.constant 16 : i32
    %34 = vector.broadcast %c16_i32_10 : i32 to vector<2x352xi32>
    %35 = arith.cmpi slt, %33, %34 : vector<2x352xi32>
    %36 = arith.andi %31, %35 : vector<2x352xi1>
    %37 = vector.extract_strided_slice %10 {offsets = [0, 0], sizes = [2, 352], strides = [1, 1]} : vector<2x358xf32> to vector<2x352xf32>
    %cst_11 = arith.constant 0.000000e+00 : f32
    %38 = vector.broadcast %cst_11 : f32 to vector<2x352xf32>
    %39 = arith.select %36, %37, %38 : vector<2x352xi1>, vector<2x352xf32>
    %c-2_i32 = arith.constant -2 : i32
    %40 = vector.broadcast %c-2_i32 : i32 to vector<2x352xi32>
    %41 = arith.addi %27, %40 : vector<2x352xi32>
    %c0_i32_12 = arith.constant 0 : i32
    %42 = vector.broadcast %c0_i32_12 : i32 to vector<2x352xi32>
    %43 = arith.cmpi sge, %41, %42 : vector<2x352xi32>
    %c-2_i32_13 = arith.constant -2 : i32
    %44 = vector.broadcast %c-2_i32_13 : i32 to vector<2x352xi32>
    %45 = arith.addi %27, %44 : vector<2x352xi32>
    %c16_i32_14 = arith.constant 16 : i32
    %46 = vector.broadcast %c16_i32_14 : i32 to vector<2x352xi32>
    %47 = arith.cmpi slt, %45, %46 : vector<2x352xi32>
    %48 = arith.andi %43, %47 : vector<2x352xi1>
    %49 = vector.extract_strided_slice %10 {offsets = [0, 1], sizes = [2, 352], strides = [1, 1]} : vector<2x358xf32> to vector<2x352xf32>
    %cst_15 = arith.constant 0.000000e+00 : f32
    %50 = vector.broadcast %cst_15 : f32 to vector<2x352xf32>
    %51 = arith.select %48, %49, %50 : vector<2x352xi1>, vector<2x352xf32>
    %c-1_i32 = arith.constant -1 : i32
    %52 = vector.broadcast %c-1_i32 : i32 to vector<2x352xi32>
    %53 = arith.addi %27, %52 : vector<2x352xi32>
    %c0_i32_16 = arith.constant 0 : i32
    %54 = vector.broadcast %c0_i32_16 : i32 to vector<2x352xi32>
    %55 = arith.cmpi sge, %53, %54 : vector<2x352xi32>
    %c-1_i32_17 = arith.constant -1 : i32
    %56 = vector.broadcast %c-1_i32_17 : i32 to vector<2x352xi32>
    %57 = arith.addi %27, %56 : vector<2x352xi32>
    %c16_i32_18 = arith.constant 16 : i32
    %58 = vector.broadcast %c16_i32_18 : i32 to vector<2x352xi32>
    %59 = arith.cmpi slt, %57, %58 : vector<2x352xi32>
    %60 = arith.andi %55, %59 : vector<2x352xi1>
    %61 = vector.extract_strided_slice %10 {offsets = [0, 2], sizes = [2, 352], strides = [1, 1]} : vector<2x358xf32> to vector<2x352xf32>
    %cst_19 = arith.constant 0.000000e+00 : f32
    %62 = vector.broadcast %cst_19 : f32 to vector<2x352xf32>
    %63 = arith.select %60, %61, %62 : vector<2x352xi1>, vector<2x352xf32>
    %c0_i32_20 = arith.constant 0 : i32
    %64 = vector.broadcast %c0_i32_20 : i32 to vector<2x352xi32>
    %65 = arith.addi %27, %64 : vector<2x352xi32>
    %c0_i32_21 = arith.constant 0 : i32
    %66 = vector.broadcast %c0_i32_21 : i32 to vector<2x352xi32>
    %67 = arith.cmpi sge, %65, %66 : vector<2x352xi32>
    %c0_i32_22 = arith.constant 0 : i32
    %68 = vector.broadcast %c0_i32_22 : i32 to vector<2x352xi32>
    %69 = arith.addi %27, %68 : vector<2x352xi32>
    %c16_i32_23 = arith.constant 16 : i32
    %70 = vector.broadcast %c16_i32_23 : i32 to vector<2x352xi32>
    %71 = arith.cmpi slt, %69, %70 : vector<2x352xi32>
    %72 = arith.andi %67, %71 : vector<2x352xi1>
    %73 = vector.extract_strided_slice %10 {offsets = [0, 3], sizes = [2, 352], strides = [1, 1]} : vector<2x358xf32> to vector<2x352xf32>
    %cst_24 = arith.constant 0.000000e+00 : f32
    %74 = vector.broadcast %cst_24 : f32 to vector<2x352xf32>
    %75 = arith.select %72, %73, %74 : vector<2x352xi1>, vector<2x352xf32>
    %c1_i32_25 = arith.constant 1 : i32
    %76 = vector.broadcast %c1_i32_25 : i32 to vector<2x352xi32>
    %77 = arith.addi %27, %76 : vector<2x352xi32>
    %c0_i32_26 = arith.constant 0 : i32
    %78 = vector.broadcast %c0_i32_26 : i32 to vector<2x352xi32>
    %79 = arith.cmpi sge, %77, %78 : vector<2x352xi32>
    %c1_i32_27 = arith.constant 1 : i32
    %80 = vector.broadcast %c1_i32_27 : i32 to vector<2x352xi32>
    %81 = arith.addi %27, %80 : vector<2x352xi32>
    %c16_i32_28 = arith.constant 16 : i32
    %82 = vector.broadcast %c16_i32_28 : i32 to vector<2x352xi32>
    %83 = arith.cmpi slt, %81, %82 : vector<2x352xi32>
    %84 = arith.andi %79, %83 : vector<2x352xi1>
    %85 = vector.extract_strided_slice %10 {offsets = [0, 4], sizes = [2, 352], strides = [1, 1]} : vector<2x358xf32> to vector<2x352xf32>
    %cst_29 = arith.constant 0.000000e+00 : f32
    %86 = vector.broadcast %cst_29 : f32 to vector<2x352xf32>
    %87 = arith.select %84, %85, %86 : vector<2x352xi1>, vector<2x352xf32>
    %c2_i32 = arith.constant 2 : i32
    %88 = vector.broadcast %c2_i32 : i32 to vector<2x352xi32>
    %89 = arith.addi %27, %88 : vector<2x352xi32>
    %c0_i32_30 = arith.constant 0 : i32
    %90 = vector.broadcast %c0_i32_30 : i32 to vector<2x352xi32>
    %91 = arith.cmpi sge, %89, %90 : vector<2x352xi32>
    %c2_i32_31 = arith.constant 2 : i32
    %92 = vector.broadcast %c2_i32_31 : i32 to vector<2x352xi32>
    %93 = arith.addi %27, %92 : vector<2x352xi32>
    %c16_i32_32 = arith.constant 16 : i32
    %94 = vector.broadcast %c16_i32_32 : i32 to vector<2x352xi32>
    %95 = arith.cmpi slt, %93, %94 : vector<2x352xi32>
    %96 = arith.andi %91, %95 : vector<2x352xi1>
    %97 = vector.extract_strided_slice %10 {offsets = [0, 5], sizes = [2, 352], strides = [1, 1]} : vector<2x358xf32> to vector<2x352xf32>
    %cst_33 = arith.constant 0.000000e+00 : f32
    %98 = vector.broadcast %cst_33 : f32 to vector<2x352xf32>
    %99 = arith.select %96, %97, %98 : vector<2x352xi1>, vector<2x352xf32>
    %c3_i32 = arith.constant 3 : i32
    %100 = vector.broadcast %c3_i32 : i32 to vector<2x352xi32>
    %101 = arith.addi %27, %100 : vector<2x352xi32>
    %c0_i32_34 = arith.constant 0 : i32
    %102 = vector.broadcast %c0_i32_34 : i32 to vector<2x352xi32>
    %103 = arith.cmpi sge, %101, %102 : vector<2x352xi32>
    %c3_i32_35 = arith.constant 3 : i32
    %104 = vector.broadcast %c3_i32_35 : i32 to vector<2x352xi32>
    %105 = arith.addi %27, %104 : vector<2x352xi32>
    %c16_i32_36 = arith.constant 16 : i32
    %106 = vector.broadcast %c16_i32_36 : i32 to vector<2x352xi32>
    %107 = arith.cmpi slt, %105, %106 : vector<2x352xi32>
    %108 = arith.andi %103, %107 : vector<2x352xi1>
    %109 = vector.extract_strided_slice %10 {offsets = [0, 6], sizes = [2, 352], strides = [1, 1]} : vector<2x358xf32> to vector<2x352xf32>
    %cst_37 = arith.constant 0.000000e+00 : f32
    %110 = vector.broadcast %cst_37 : f32 to vector<2x352xf32>
    %111 = arith.select %108, %109, %110 : vector<2x352xi1>, vector<2x352xf32>
    %112 = tpu.iota {dimensions = array<i32: 0>} : vector<2x1xi32>
    %c1_i32_38 = arith.constant 1 : i32
    %113 = vector.broadcast %c1_i32_38 : i32 to vector<2x1xi32>
    %114 = arith.cmpi slt, %112, %113 : vector<2x1xi32>
    %cst_39 = arith.constant 0.000000e+00 : f32
    %115 = vector.broadcast %cst_39 : f32 to vector<2x256xf32>
    %cst_40 = arith.constant 0.000000e+00 : f32
    %116 = vector.broadcast %cst_40 : f32 to vector<2x352xf32>
    %cst_41 = arith.constant 0.000000e+00 : f32
    %117 = vector.broadcast %cst_41 : f32 to vector<2x352xf32>
    %c0_42 = arith.constant 0 : index
    %118 = memref.load %arg1[%c0_42] : memref<98xf32, #tpu.memory_space<smem>>
    %c49 = arith.constant 49 : index
    %119 = memref.load %arg1[%c49] : memref<98xf32, #tpu.memory_space<smem>>
    %120 = vector.broadcast %118 : f32 to vector<2x1xf32>
    %121 = vector.broadcast %119 : f32 to vector<2x1xf32>
    %122 = arith.select %114, %120, %121 : vector<2x1xi1>, vector<2x1xf32>
    %123 = vector.broadcast %122 : vector<2x1xf32> to vector<2x352xf32>
    %124 = arith.mulf %123, %39 : vector<2x352xf32>
    %125 = arith.addf %116, %124 : vector<2x352xf32>
    %c1 = arith.constant 1 : index
    %126 = memref.load %arg1[%c1] : memref<98xf32, #tpu.memory_space<smem>>
    %c50 = arith.constant 50 : index
    %127 = memref.load %arg1[%c50] : memref<98xf32, #tpu.memory_space<smem>>
    %128 = vector.broadcast %126 : f32 to vector<2x1xf32>
    %129 = vector.broadcast %127 : f32 to vector<2x1xf32>
    %130 = arith.select %114, %128, %129 : vector<2x1xi1>, vector<2x1xf32>
    %131 = vector.broadcast %130 : vector<2x1xf32> to vector<2x352xf32>
    %132 = arith.mulf %131, %51 : vector<2x352xf32>
    %133 = arith.addf %117, %132 : vector<2x352xf32>
    %c2 = arith.constant 2 : index
    %134 = memref.load %arg1[%c2] : memref<98xf32, #tpu.memory_space<smem>>
    %c51 = arith.constant 51 : index
    %135 = memref.load %arg1[%c51] : memref<98xf32, #tpu.memory_space<smem>>
    %136 = vector.broadcast %134 : f32 to vector<2x1xf32>
    %137 = vector.broadcast %135 : f32 to vector<2x1xf32>
    %138 = arith.select %114, %136, %137 : vector<2x1xi1>, vector<2x1xf32>
    %139 = vector.broadcast %138 : vector<2x1xf32> to vector<2x352xf32>
    %140 = arith.mulf %139, %63 : vector<2x352xf32>
    %141 = arith.addf %125, %140 : vector<2x352xf32>
    %c3 = arith.constant 3 : index
    %142 = memref.load %arg1[%c3] : memref<98xf32, #tpu.memory_space<smem>>
    %c52 = arith.constant 52 : index
    %143 = memref.load %arg1[%c52] : memref<98xf32, #tpu.memory_space<smem>>
    %144 = vector.broadcast %142 : f32 to vector<2x1xf32>
    %145 = vector.broadcast %143 : f32 to vector<2x1xf32>
    %146 = arith.select %114, %144, %145 : vector<2x1xi1>, vector<2x1xf32>
    %147 = vector.broadcast %146 : vector<2x1xf32> to vector<2x352xf32>
    %148 = arith.mulf %147, %75 : vector<2x352xf32>
    %149 = arith.addf %133, %148 : vector<2x352xf32>
    %c4 = arith.constant 4 : index
    %150 = memref.load %arg1[%c4] : memref<98xf32, #tpu.memory_space<smem>>
    %c53 = arith.constant 53 : index
    %151 = memref.load %arg1[%c53] : memref<98xf32, #tpu.memory_space<smem>>
    %152 = vector.broadcast %150 : f32 to vector<2x1xf32>
    %153 = vector.broadcast %151 : f32 to vector<2x1xf32>
    %154 = arith.select %114, %152, %153 : vector<2x1xi1>, vector<2x1xf32>
    %155 = vector.broadcast %154 : vector<2x1xf32> to vector<2x352xf32>
    %156 = arith.mulf %155, %87 : vector<2x352xf32>
    %157 = arith.addf %141, %156 : vector<2x352xf32>
    %c5 = arith.constant 5 : index
    %158 = memref.load %arg1[%c5] : memref<98xf32, #tpu.memory_space<smem>>
    %c54 = arith.constant 54 : index
    %159 = memref.load %arg1[%c54] : memref<98xf32, #tpu.memory_space<smem>>
    %160 = vector.broadcast %158 : f32 to vector<2x1xf32>
    %161 = vector.broadcast %159 : f32 to vector<2x1xf32>
    %162 = arith.select %114, %160, %161 : vector<2x1xi1>, vector<2x1xf32>
    %163 = vector.broadcast %162 : vector<2x1xf32> to vector<2x352xf32>
    %164 = arith.mulf %163, %99 : vector<2x352xf32>
    %165 = arith.addf %149, %164 : vector<2x352xf32>
    %c6 = arith.constant 6 : index
    %166 = memref.load %arg1[%c6] : memref<98xf32, #tpu.memory_space<smem>>
    %c55 = arith.constant 55 : index
    %167 = memref.load %arg1[%c55] : memref<98xf32, #tpu.memory_space<smem>>
    %168 = vector.broadcast %166 : f32 to vector<2x1xf32>
    %169 = vector.broadcast %167 : f32 to vector<2x1xf32>
    %170 = arith.select %114, %168, %169 : vector<2x1xi1>, vector<2x1xf32>
    %171 = vector.broadcast %170 : vector<2x1xf32> to vector<2x352xf32>
    %172 = arith.mulf %171, %111 : vector<2x352xf32>
    %173 = arith.addf %157, %172 : vector<2x352xf32>
    %174 = arith.addf %173, %165 : vector<2x352xf32>
    %175 = vector.extract_strided_slice %174 {offsets = [0, 0], sizes = [2, 256], strides = [1, 1]} : vector<2x352xf32> to vector<2x256xf32>
    %176 = arith.addf %115, %175 : vector<2x256xf32>
    %cst_43 = arith.constant 0.000000e+00 : f32
    %177 = vector.broadcast %cst_43 : f32 to vector<2x352xf32>
    %cst_44 = arith.constant 0.000000e+00 : f32
    %178 = vector.broadcast %cst_44 : f32 to vector<2x352xf32>
    %c7 = arith.constant 7 : index
    %179 = memref.load %arg1[%c7] : memref<98xf32, #tpu.memory_space<smem>>
    %c56 = arith.constant 56 : index
    %180 = memref.load %arg1[%c56] : memref<98xf32, #tpu.memory_space<smem>>
    %181 = vector.broadcast %179 : f32 to vector<2x1xf32>
    %182 = vector.broadcast %180 : f32 to vector<2x1xf32>
    %183 = arith.select %114, %181, %182 : vector<2x1xi1>, vector<2x1xf32>
    %184 = vector.broadcast %183 : vector<2x1xf32> to vector<2x352xf32>
    %185 = arith.mulf %184, %39 : vector<2x352xf32>
    %186 = arith.addf %177, %185 : vector<2x352xf32>
    %c8 = arith.constant 8 : index
    %187 = memref.load %arg1[%c8] : memref<98xf32, #tpu.memory_space<smem>>
    %c57 = arith.constant 57 : index
    %188 = memref.load %arg1[%c57] : memref<98xf32, #tpu.memory_space<smem>>
    %189 = vector.broadcast %187 : f32 to vector<2x1xf32>
    %190 = vector.broadcast %188 : f32 to vector<2x1xf32>
    %191 = arith.select %114, %189, %190 : vector<2x1xi1>, vector<2x1xf32>
    %192 = vector.broadcast %191 : vector<2x1xf32> to vector<2x352xf32>
    %193 = arith.mulf %192, %51 : vector<2x352xf32>
    %194 = arith.addf %178, %193 : vector<2x352xf32>
    %c9 = arith.constant 9 : index
    %195 = memref.load %arg1[%c9] : memref<98xf32, #tpu.memory_space<smem>>
    %c58 = arith.constant 58 : index
    %196 = memref.load %arg1[%c58] : memref<98xf32, #tpu.memory_space<smem>>
    %197 = vector.broadcast %195 : f32 to vector<2x1xf32>
    %198 = vector.broadcast %196 : f32 to vector<2x1xf32>
    %199 = arith.select %114, %197, %198 : vector<2x1xi1>, vector<2x1xf32>
    %200 = vector.broadcast %199 : vector<2x1xf32> to vector<2x352xf32>
    %201 = arith.mulf %200, %63 : vector<2x352xf32>
    %202 = arith.addf %186, %201 : vector<2x352xf32>
    %c10 = arith.constant 10 : index
    %203 = memref.load %arg1[%c10] : memref<98xf32, #tpu.memory_space<smem>>
    %c59 = arith.constant 59 : index
    %204 = memref.load %arg1[%c59] : memref<98xf32, #tpu.memory_space<smem>>
    %205 = vector.broadcast %203 : f32 to vector<2x1xf32>
    %206 = vector.broadcast %204 : f32 to vector<2x1xf32>
    %207 = arith.select %114, %205, %206 : vector<2x1xi1>, vector<2x1xf32>
    %208 = vector.broadcast %207 : vector<2x1xf32> to vector<2x352xf32>
    %209 = arith.mulf %208, %75 : vector<2x352xf32>
    %210 = arith.addf %194, %209 : vector<2x352xf32>
    %c11 = arith.constant 11 : index
    %211 = memref.load %arg1[%c11] : memref<98xf32, #tpu.memory_space<smem>>
    %c60 = arith.constant 60 : index
    %212 = memref.load %arg1[%c60] : memref<98xf32, #tpu.memory_space<smem>>
    %213 = vector.broadcast %211 : f32 to vector<2x1xf32>
    %214 = vector.broadcast %212 : f32 to vector<2x1xf32>
    %215 = arith.select %114, %213, %214 : vector<2x1xi1>, vector<2x1xf32>
    %216 = vector.broadcast %215 : vector<2x1xf32> to vector<2x352xf32>
    %217 = arith.mulf %216, %87 : vector<2x352xf32>
    %218 = arith.addf %202, %217 : vector<2x352xf32>
    %c12 = arith.constant 12 : index
    %219 = memref.load %arg1[%c12] : memref<98xf32, #tpu.memory_space<smem>>
    %c61 = arith.constant 61 : index
    %220 = memref.load %arg1[%c61] : memref<98xf32, #tpu.memory_space<smem>>
    %221 = vector.broadcast %219 : f32 to vector<2x1xf32>
    %222 = vector.broadcast %220 : f32 to vector<2x1xf32>
    %223 = arith.select %114, %221, %222 : vector<2x1xi1>, vector<2x1xf32>
    %224 = vector.broadcast %223 : vector<2x1xf32> to vector<2x352xf32>
    %225 = arith.mulf %224, %99 : vector<2x352xf32>
    %226 = arith.addf %210, %225 : vector<2x352xf32>
    %c13 = arith.constant 13 : index
    %227 = memref.load %arg1[%c13] : memref<98xf32, #tpu.memory_space<smem>>
    %c62 = arith.constant 62 : index
    %228 = memref.load %arg1[%c62] : memref<98xf32, #tpu.memory_space<smem>>
    %229 = vector.broadcast %227 : f32 to vector<2x1xf32>
    %230 = vector.broadcast %228 : f32 to vector<2x1xf32>
    %231 = arith.select %114, %229, %230 : vector<2x1xi1>, vector<2x1xf32>
    %232 = vector.broadcast %231 : vector<2x1xf32> to vector<2x352xf32>
    %233 = arith.mulf %232, %111 : vector<2x352xf32>
    %234 = arith.addf %218, %233 : vector<2x352xf32>
    %235 = arith.addf %234, %226 : vector<2x352xf32>
    %236 = vector.extract_strided_slice %235 {offsets = [0, 16], sizes = [2, 256], strides = [1, 1]} : vector<2x352xf32> to vector<2x256xf32>
    %237 = arith.addf %176, %236 : vector<2x256xf32>
    %cst_45 = arith.constant 0.000000e+00 : f32
    %238 = vector.broadcast %cst_45 : f32 to vector<2x352xf32>
    %cst_46 = arith.constant 0.000000e+00 : f32
    %239 = vector.broadcast %cst_46 : f32 to vector<2x352xf32>
    %c14 = arith.constant 14 : index
    %240 = memref.load %arg1[%c14] : memref<98xf32, #tpu.memory_space<smem>>
    %c63 = arith.constant 63 : index
    %241 = memref.load %arg1[%c63] : memref<98xf32, #tpu.memory_space<smem>>
    %242 = vector.broadcast %240 : f32 to vector<2x1xf32>
    %243 = vector.broadcast %241 : f32 to vector<2x1xf32>
    %244 = arith.select %114, %242, %243 : vector<2x1xi1>, vector<2x1xf32>
    %245 = vector.broadcast %244 : vector<2x1xf32> to vector<2x352xf32>
    %246 = arith.mulf %245, %39 : vector<2x352xf32>
    %247 = arith.addf %238, %246 : vector<2x352xf32>
    %c15 = arith.constant 15 : index
    %248 = memref.load %arg1[%c15] : memref<98xf32, #tpu.memory_space<smem>>
    %c64 = arith.constant 64 : index
    %249 = memref.load %arg1[%c64] : memref<98xf32, #tpu.memory_space<smem>>
    %250 = vector.broadcast %248 : f32 to vector<2x1xf32>
    %251 = vector.broadcast %249 : f32 to vector<2x1xf32>
    %252 = arith.select %114, %250, %251 : vector<2x1xi1>, vector<2x1xf32>
    %253 = vector.broadcast %252 : vector<2x1xf32> to vector<2x352xf32>
    %254 = arith.mulf %253, %51 : vector<2x352xf32>
    %255 = arith.addf %239, %254 : vector<2x352xf32>
    %c16 = arith.constant 16 : index
    %256 = memref.load %arg1[%c16] : memref<98xf32, #tpu.memory_space<smem>>
    %c65 = arith.constant 65 : index
    %257 = memref.load %arg1[%c65] : memref<98xf32, #tpu.memory_space<smem>>
    %258 = vector.broadcast %256 : f32 to vector<2x1xf32>
    %259 = vector.broadcast %257 : f32 to vector<2x1xf32>
    %260 = arith.select %114, %258, %259 : vector<2x1xi1>, vector<2x1xf32>
    %261 = vector.broadcast %260 : vector<2x1xf32> to vector<2x352xf32>
    %262 = arith.mulf %261, %63 : vector<2x352xf32>
    %263 = arith.addf %247, %262 : vector<2x352xf32>
    %c17 = arith.constant 17 : index
    %264 = memref.load %arg1[%c17] : memref<98xf32, #tpu.memory_space<smem>>
    %c66 = arith.constant 66 : index
    %265 = memref.load %arg1[%c66] : memref<98xf32, #tpu.memory_space<smem>>
    %266 = vector.broadcast %264 : f32 to vector<2x1xf32>
    %267 = vector.broadcast %265 : f32 to vector<2x1xf32>
    %268 = arith.select %114, %266, %267 : vector<2x1xi1>, vector<2x1xf32>
    %269 = vector.broadcast %268 : vector<2x1xf32> to vector<2x352xf32>
    %270 = arith.mulf %269, %75 : vector<2x352xf32>
    %271 = arith.addf %255, %270 : vector<2x352xf32>
    %c18 = arith.constant 18 : index
    %272 = memref.load %arg1[%c18] : memref<98xf32, #tpu.memory_space<smem>>
    %c67 = arith.constant 67 : index
    %273 = memref.load %arg1[%c67] : memref<98xf32, #tpu.memory_space<smem>>
    %274 = vector.broadcast %272 : f32 to vector<2x1xf32>
    %275 = vector.broadcast %273 : f32 to vector<2x1xf32>
    %276 = arith.select %114, %274, %275 : vector<2x1xi1>, vector<2x1xf32>
    %277 = vector.broadcast %276 : vector<2x1xf32> to vector<2x352xf32>
    %278 = arith.mulf %277, %87 : vector<2x352xf32>
    %279 = arith.addf %263, %278 : vector<2x352xf32>
    %c19 = arith.constant 19 : index
    %280 = memref.load %arg1[%c19] : memref<98xf32, #tpu.memory_space<smem>>
    %c68 = arith.constant 68 : index
    %281 = memref.load %arg1[%c68] : memref<98xf32, #tpu.memory_space<smem>>
    %282 = vector.broadcast %280 : f32 to vector<2x1xf32>
    %283 = vector.broadcast %281 : f32 to vector<2x1xf32>
    %284 = arith.select %114, %282, %283 : vector<2x1xi1>, vector<2x1xf32>
    %285 = vector.broadcast %284 : vector<2x1xf32> to vector<2x352xf32>
    %286 = arith.mulf %285, %99 : vector<2x352xf32>
    %287 = arith.addf %271, %286 : vector<2x352xf32>
    %c20 = arith.constant 20 : index
    %288 = memref.load %arg1[%c20] : memref<98xf32, #tpu.memory_space<smem>>
    %c69 = arith.constant 69 : index
    %289 = memref.load %arg1[%c69] : memref<98xf32, #tpu.memory_space<smem>>
    %290 = vector.broadcast %288 : f32 to vector<2x1xf32>
    %291 = vector.broadcast %289 : f32 to vector<2x1xf32>
    %292 = arith.select %114, %290, %291 : vector<2x1xi1>, vector<2x1xf32>
    %293 = vector.broadcast %292 : vector<2x1xf32> to vector<2x352xf32>
    %294 = arith.mulf %293, %111 : vector<2x352xf32>
    %295 = arith.addf %279, %294 : vector<2x352xf32>
    %296 = arith.addf %295, %287 : vector<2x352xf32>
    %297 = vector.extract_strided_slice %296 {offsets = [0, 32], sizes = [2, 256], strides = [1, 1]} : vector<2x352xf32> to vector<2x256xf32>
    %298 = arith.addf %237, %297 : vector<2x256xf32>
    %cst_47 = arith.constant 0.000000e+00 : f32
    %299 = vector.broadcast %cst_47 : f32 to vector<2x352xf32>
    %cst_48 = arith.constant 0.000000e+00 : f32
    %300 = vector.broadcast %cst_48 : f32 to vector<2x352xf32>
    %c21 = arith.constant 21 : index
    %301 = memref.load %arg1[%c21] : memref<98xf32, #tpu.memory_space<smem>>
    %c70 = arith.constant 70 : index
    %302 = memref.load %arg1[%c70] : memref<98xf32, #tpu.memory_space<smem>>
    %303 = vector.broadcast %301 : f32 to vector<2x1xf32>
    %304 = vector.broadcast %302 : f32 to vector<2x1xf32>
    %305 = arith.select %114, %303, %304 : vector<2x1xi1>, vector<2x1xf32>
    %306 = vector.broadcast %305 : vector<2x1xf32> to vector<2x352xf32>
    %307 = arith.mulf %306, %39 : vector<2x352xf32>
    %308 = arith.addf %299, %307 : vector<2x352xf32>
    %c22 = arith.constant 22 : index
    %309 = memref.load %arg1[%c22] : memref<98xf32, #tpu.memory_space<smem>>
    %c71 = arith.constant 71 : index
    %310 = memref.load %arg1[%c71] : memref<98xf32, #tpu.memory_space<smem>>
    %311 = vector.broadcast %309 : f32 to vector<2x1xf32>
    %312 = vector.broadcast %310 : f32 to vector<2x1xf32>
    %313 = arith.select %114, %311, %312 : vector<2x1xi1>, vector<2x1xf32>
    %314 = vector.broadcast %313 : vector<2x1xf32> to vector<2x352xf32>
    %315 = arith.mulf %314, %51 : vector<2x352xf32>
    %316 = arith.addf %300, %315 : vector<2x352xf32>
    %c23 = arith.constant 23 : index
    %317 = memref.load %arg1[%c23] : memref<98xf32, #tpu.memory_space<smem>>
    %c72 = arith.constant 72 : index
    %318 = memref.load %arg1[%c72] : memref<98xf32, #tpu.memory_space<smem>>
    %319 = vector.broadcast %317 : f32 to vector<2x1xf32>
    %320 = vector.broadcast %318 : f32 to vector<2x1xf32>
    %321 = arith.select %114, %319, %320 : vector<2x1xi1>, vector<2x1xf32>
    %322 = vector.broadcast %321 : vector<2x1xf32> to vector<2x352xf32>
    %323 = arith.mulf %322, %63 : vector<2x352xf32>
    %324 = arith.addf %308, %323 : vector<2x352xf32>
    %c24 = arith.constant 24 : index
    %325 = memref.load %arg1[%c24] : memref<98xf32, #tpu.memory_space<smem>>
    %c73 = arith.constant 73 : index
    %326 = memref.load %arg1[%c73] : memref<98xf32, #tpu.memory_space<smem>>
    %327 = vector.broadcast %325 : f32 to vector<2x1xf32>
    %328 = vector.broadcast %326 : f32 to vector<2x1xf32>
    %329 = arith.select %114, %327, %328 : vector<2x1xi1>, vector<2x1xf32>
    %330 = vector.broadcast %329 : vector<2x1xf32> to vector<2x352xf32>
    %331 = arith.mulf %330, %75 : vector<2x352xf32>
    %332 = arith.addf %316, %331 : vector<2x352xf32>
    %c25 = arith.constant 25 : index
    %333 = memref.load %arg1[%c25] : memref<98xf32, #tpu.memory_space<smem>>
    %c74 = arith.constant 74 : index
    %334 = memref.load %arg1[%c74] : memref<98xf32, #tpu.memory_space<smem>>
    %335 = vector.broadcast %333 : f32 to vector<2x1xf32>
    %336 = vector.broadcast %334 : f32 to vector<2x1xf32>
    %337 = arith.select %114, %335, %336 : vector<2x1xi1>, vector<2x1xf32>
    %338 = vector.broadcast %337 : vector<2x1xf32> to vector<2x352xf32>
    %339 = arith.mulf %338, %87 : vector<2x352xf32>
    %340 = arith.addf %324, %339 : vector<2x352xf32>
    %c26 = arith.constant 26 : index
    %341 = memref.load %arg1[%c26] : memref<98xf32, #tpu.memory_space<smem>>
    %c75 = arith.constant 75 : index
    %342 = memref.load %arg1[%c75] : memref<98xf32, #tpu.memory_space<smem>>
    %343 = vector.broadcast %341 : f32 to vector<2x1xf32>
    %344 = vector.broadcast %342 : f32 to vector<2x1xf32>
    %345 = arith.select %114, %343, %344 : vector<2x1xi1>, vector<2x1xf32>
    %346 = vector.broadcast %345 : vector<2x1xf32> to vector<2x352xf32>
    %347 = arith.mulf %346, %99 : vector<2x352xf32>
    %348 = arith.addf %332, %347 : vector<2x352xf32>
    %c27 = arith.constant 27 : index
    %349 = memref.load %arg1[%c27] : memref<98xf32, #tpu.memory_space<smem>>
    %c76 = arith.constant 76 : index
    %350 = memref.load %arg1[%c76] : memref<98xf32, #tpu.memory_space<smem>>
    %351 = vector.broadcast %349 : f32 to vector<2x1xf32>
    %352 = vector.broadcast %350 : f32 to vector<2x1xf32>
    %353 = arith.select %114, %351, %352 : vector<2x1xi1>, vector<2x1xf32>
    %354 = vector.broadcast %353 : vector<2x1xf32> to vector<2x352xf32>
    %355 = arith.mulf %354, %111 : vector<2x352xf32>
    %356 = arith.addf %340, %355 : vector<2x352xf32>
    %357 = arith.addf %356, %348 : vector<2x352xf32>
    %358 = vector.extract_strided_slice %357 {offsets = [0, 48], sizes = [2, 256], strides = [1, 1]} : vector<2x352xf32> to vector<2x256xf32>
    %359 = arith.addf %298, %358 : vector<2x256xf32>
    %cst_49 = arith.constant 0.000000e+00 : f32
    %360 = vector.broadcast %cst_49 : f32 to vector<2x352xf32>
    %cst_50 = arith.constant 0.000000e+00 : f32
    %361 = vector.broadcast %cst_50 : f32 to vector<2x352xf32>
    %c28 = arith.constant 28 : index
    %362 = memref.load %arg1[%c28] : memref<98xf32, #tpu.memory_space<smem>>
    %c77 = arith.constant 77 : index
    %363 = memref.load %arg1[%c77] : memref<98xf32, #tpu.memory_space<smem>>
    %364 = vector.broadcast %362 : f32 to vector<2x1xf32>
    %365 = vector.broadcast %363 : f32 to vector<2x1xf32>
    %366 = arith.select %114, %364, %365 : vector<2x1xi1>, vector<2x1xf32>
    %367 = vector.broadcast %366 : vector<2x1xf32> to vector<2x352xf32>
    %368 = arith.mulf %367, %39 : vector<2x352xf32>
    %369 = arith.addf %360, %368 : vector<2x352xf32>
    %c29 = arith.constant 29 : index
    %370 = memref.load %arg1[%c29] : memref<98xf32, #tpu.memory_space<smem>>
    %c78 = arith.constant 78 : index
    %371 = memref.load %arg1[%c78] : memref<98xf32, #tpu.memory_space<smem>>
    %372 = vector.broadcast %370 : f32 to vector<2x1xf32>
    %373 = vector.broadcast %371 : f32 to vector<2x1xf32>
    %374 = arith.select %114, %372, %373 : vector<2x1xi1>, vector<2x1xf32>
    %375 = vector.broadcast %374 : vector<2x1xf32> to vector<2x352xf32>
    %376 = arith.mulf %375, %51 : vector<2x352xf32>
    %377 = arith.addf %361, %376 : vector<2x352xf32>
    %c30 = arith.constant 30 : index
    %378 = memref.load %arg1[%c30] : memref<98xf32, #tpu.memory_space<smem>>
    %c79 = arith.constant 79 : index
    %379 = memref.load %arg1[%c79] : memref<98xf32, #tpu.memory_space<smem>>
    %380 = vector.broadcast %378 : f32 to vector<2x1xf32>
    %381 = vector.broadcast %379 : f32 to vector<2x1xf32>
    %382 = arith.select %114, %380, %381 : vector<2x1xi1>, vector<2x1xf32>
    %383 = vector.broadcast %382 : vector<2x1xf32> to vector<2x352xf32>
    %384 = arith.mulf %383, %63 : vector<2x352xf32>
    %385 = arith.addf %369, %384 : vector<2x352xf32>
    %c31 = arith.constant 31 : index
    %386 = memref.load %arg1[%c31] : memref<98xf32, #tpu.memory_space<smem>>
    %c80 = arith.constant 80 : index
    %387 = memref.load %arg1[%c80] : memref<98xf32, #tpu.memory_space<smem>>
    %388 = vector.broadcast %386 : f32 to vector<2x1xf32>
    %389 = vector.broadcast %387 : f32 to vector<2x1xf32>
    %390 = arith.select %114, %388, %389 : vector<2x1xi1>, vector<2x1xf32>
    %391 = vector.broadcast %390 : vector<2x1xf32> to vector<2x352xf32>
    %392 = arith.mulf %391, %75 : vector<2x352xf32>
    %393 = arith.addf %377, %392 : vector<2x352xf32>
    %c32 = arith.constant 32 : index
    %394 = memref.load %arg1[%c32] : memref<98xf32, #tpu.memory_space<smem>>
    %c81 = arith.constant 81 : index
    %395 = memref.load %arg1[%c81] : memref<98xf32, #tpu.memory_space<smem>>
    %396 = vector.broadcast %394 : f32 to vector<2x1xf32>
    %397 = vector.broadcast %395 : f32 to vector<2x1xf32>
    %398 = arith.select %114, %396, %397 : vector<2x1xi1>, vector<2x1xf32>
    %399 = vector.broadcast %398 : vector<2x1xf32> to vector<2x352xf32>
    %400 = arith.mulf %399, %87 : vector<2x352xf32>
    %401 = arith.addf %385, %400 : vector<2x352xf32>
    %c33 = arith.constant 33 : index
    %402 = memref.load %arg1[%c33] : memref<98xf32, #tpu.memory_space<smem>>
    %c82 = arith.constant 82 : index
    %403 = memref.load %arg1[%c82] : memref<98xf32, #tpu.memory_space<smem>>
    %404 = vector.broadcast %402 : f32 to vector<2x1xf32>
    %405 = vector.broadcast %403 : f32 to vector<2x1xf32>
    %406 = arith.select %114, %404, %405 : vector<2x1xi1>, vector<2x1xf32>
    %407 = vector.broadcast %406 : vector<2x1xf32> to vector<2x352xf32>
    %408 = arith.mulf %407, %99 : vector<2x352xf32>
    %409 = arith.addf %393, %408 : vector<2x352xf32>
    %c34 = arith.constant 34 : index
    %410 = memref.load %arg1[%c34] : memref<98xf32, #tpu.memory_space<smem>>
    %c83 = arith.constant 83 : index
    %411 = memref.load %arg1[%c83] : memref<98xf32, #tpu.memory_space<smem>>
    %412 = vector.broadcast %410 : f32 to vector<2x1xf32>
    %413 = vector.broadcast %411 : f32 to vector<2x1xf32>
    %414 = arith.select %114, %412, %413 : vector<2x1xi1>, vector<2x1xf32>
    %415 = vector.broadcast %414 : vector<2x1xf32> to vector<2x352xf32>
    %416 = arith.mulf %415, %111 : vector<2x352xf32>
    %417 = arith.addf %401, %416 : vector<2x352xf32>
    %418 = arith.addf %417, %409 : vector<2x352xf32>
    %419 = vector.extract_strided_slice %418 {offsets = [0, 64], sizes = [2, 256], strides = [1, 1]} : vector<2x352xf32> to vector<2x256xf32>
    %420 = arith.addf %359, %419 : vector<2x256xf32>
    %cst_51 = arith.constant 0.000000e+00 : f32
    %421 = vector.broadcast %cst_51 : f32 to vector<2x352xf32>
    %cst_52 = arith.constant 0.000000e+00 : f32
    %422 = vector.broadcast %cst_52 : f32 to vector<2x352xf32>
    %c35 = arith.constant 35 : index
    %423 = memref.load %arg1[%c35] : memref<98xf32, #tpu.memory_space<smem>>
    %c84 = arith.constant 84 : index
    %424 = memref.load %arg1[%c84] : memref<98xf32, #tpu.memory_space<smem>>
    %425 = vector.broadcast %423 : f32 to vector<2x1xf32>
    %426 = vector.broadcast %424 : f32 to vector<2x1xf32>
    %427 = arith.select %114, %425, %426 : vector<2x1xi1>, vector<2x1xf32>
    %428 = vector.broadcast %427 : vector<2x1xf32> to vector<2x352xf32>
    %429 = arith.mulf %428, %39 : vector<2x352xf32>
    %430 = arith.addf %421, %429 : vector<2x352xf32>
    %c36 = arith.constant 36 : index
    %431 = memref.load %arg1[%c36] : memref<98xf32, #tpu.memory_space<smem>>
    %c85 = arith.constant 85 : index
    %432 = memref.load %arg1[%c85] : memref<98xf32, #tpu.memory_space<smem>>
    %433 = vector.broadcast %431 : f32 to vector<2x1xf32>
    %434 = vector.broadcast %432 : f32 to vector<2x1xf32>
    %435 = arith.select %114, %433, %434 : vector<2x1xi1>, vector<2x1xf32>
    %436 = vector.broadcast %435 : vector<2x1xf32> to vector<2x352xf32>
    %437 = arith.mulf %436, %51 : vector<2x352xf32>
    %438 = arith.addf %422, %437 : vector<2x352xf32>
    %c37 = arith.constant 37 : index
    %439 = memref.load %arg1[%c37] : memref<98xf32, #tpu.memory_space<smem>>
    %c86 = arith.constant 86 : index
    %440 = memref.load %arg1[%c86] : memref<98xf32, #tpu.memory_space<smem>>
    %441 = vector.broadcast %439 : f32 to vector<2x1xf32>
    %442 = vector.broadcast %440 : f32 to vector<2x1xf32>
    %443 = arith.select %114, %441, %442 : vector<2x1xi1>, vector<2x1xf32>
    %444 = vector.broadcast %443 : vector<2x1xf32> to vector<2x352xf32>
    %445 = arith.mulf %444, %63 : vector<2x352xf32>
    %446 = arith.addf %430, %445 : vector<2x352xf32>
    %c38 = arith.constant 38 : index
    %447 = memref.load %arg1[%c38] : memref<98xf32, #tpu.memory_space<smem>>
    %c87 = arith.constant 87 : index
    %448 = memref.load %arg1[%c87] : memref<98xf32, #tpu.memory_space<smem>>
    %449 = vector.broadcast %447 : f32 to vector<2x1xf32>
    %450 = vector.broadcast %448 : f32 to vector<2x1xf32>
    %451 = arith.select %114, %449, %450 : vector<2x1xi1>, vector<2x1xf32>
    %452 = vector.broadcast %451 : vector<2x1xf32> to vector<2x352xf32>
    %453 = arith.mulf %452, %75 : vector<2x352xf32>
    %454 = arith.addf %438, %453 : vector<2x352xf32>
    %c39 = arith.constant 39 : index
    %455 = memref.load %arg1[%c39] : memref<98xf32, #tpu.memory_space<smem>>
    %c88 = arith.constant 88 : index
    %456 = memref.load %arg1[%c88] : memref<98xf32, #tpu.memory_space<smem>>
    %457 = vector.broadcast %455 : f32 to vector<2x1xf32>
    %458 = vector.broadcast %456 : f32 to vector<2x1xf32>
    %459 = arith.select %114, %457, %458 : vector<2x1xi1>, vector<2x1xf32>
    %460 = vector.broadcast %459 : vector<2x1xf32> to vector<2x352xf32>
    %461 = arith.mulf %460, %87 : vector<2x352xf32>
    %462 = arith.addf %446, %461 : vector<2x352xf32>
    %c40 = arith.constant 40 : index
    %463 = memref.load %arg1[%c40] : memref<98xf32, #tpu.memory_space<smem>>
    %c89 = arith.constant 89 : index
    %464 = memref.load %arg1[%c89] : memref<98xf32, #tpu.memory_space<smem>>
    %465 = vector.broadcast %463 : f32 to vector<2x1xf32>
    %466 = vector.broadcast %464 : f32 to vector<2x1xf32>
    %467 = arith.select %114, %465, %466 : vector<2x1xi1>, vector<2x1xf32>
    %468 = vector.broadcast %467 : vector<2x1xf32> to vector<2x352xf32>
    %469 = arith.mulf %468, %99 : vector<2x352xf32>
    %470 = arith.addf %454, %469 : vector<2x352xf32>
    %c41 = arith.constant 41 : index
    %471 = memref.load %arg1[%c41] : memref<98xf32, #tpu.memory_space<smem>>
    %c90 = arith.constant 90 : index
    %472 = memref.load %arg1[%c90] : memref<98xf32, #tpu.memory_space<smem>>
    %473 = vector.broadcast %471 : f32 to vector<2x1xf32>
    %474 = vector.broadcast %472 : f32 to vector<2x1xf32>
    %475 = arith.select %114, %473, %474 : vector<2x1xi1>, vector<2x1xf32>
    %476 = vector.broadcast %475 : vector<2x1xf32> to vector<2x352xf32>
    %477 = arith.mulf %476, %111 : vector<2x352xf32>
    %478 = arith.addf %462, %477 : vector<2x352xf32>
    %479 = arith.addf %478, %470 : vector<2x352xf32>
    %480 = vector.extract_strided_slice %479 {offsets = [0, 80], sizes = [2, 256], strides = [1, 1]} : vector<2x352xf32> to vector<2x256xf32>
    %481 = arith.addf %420, %480 : vector<2x256xf32>
    %cst_53 = arith.constant 0.000000e+00 : f32
    %482 = vector.broadcast %cst_53 : f32 to vector<2x352xf32>
    %cst_54 = arith.constant 0.000000e+00 : f32
    %483 = vector.broadcast %cst_54 : f32 to vector<2x352xf32>
    %c42 = arith.constant 42 : index
    %484 = memref.load %arg1[%c42] : memref<98xf32, #tpu.memory_space<smem>>
    %c91 = arith.constant 91 : index
    %485 = memref.load %arg1[%c91] : memref<98xf32, #tpu.memory_space<smem>>
    %486 = vector.broadcast %484 : f32 to vector<2x1xf32>
    %487 = vector.broadcast %485 : f32 to vector<2x1xf32>
    %488 = arith.select %114, %486, %487 : vector<2x1xi1>, vector<2x1xf32>
    %489 = vector.broadcast %488 : vector<2x1xf32> to vector<2x352xf32>
    %490 = arith.mulf %489, %39 : vector<2x352xf32>
    %491 = arith.addf %482, %490 : vector<2x352xf32>
    %c43 = arith.constant 43 : index
    %492 = memref.load %arg1[%c43] : memref<98xf32, #tpu.memory_space<smem>>
    %c92 = arith.constant 92 : index
    %493 = memref.load %arg1[%c92] : memref<98xf32, #tpu.memory_space<smem>>
    %494 = vector.broadcast %492 : f32 to vector<2x1xf32>
    %495 = vector.broadcast %493 : f32 to vector<2x1xf32>
    %496 = arith.select %114, %494, %495 : vector<2x1xi1>, vector<2x1xf32>
    %497 = vector.broadcast %496 : vector<2x1xf32> to vector<2x352xf32>
    %498 = arith.mulf %497, %51 : vector<2x352xf32>
    %499 = arith.addf %483, %498 : vector<2x352xf32>
    %c44 = arith.constant 44 : index
    %500 = memref.load %arg1[%c44] : memref<98xf32, #tpu.memory_space<smem>>
    %c93 = arith.constant 93 : index
    %501 = memref.load %arg1[%c93] : memref<98xf32, #tpu.memory_space<smem>>
    %502 = vector.broadcast %500 : f32 to vector<2x1xf32>
    %503 = vector.broadcast %501 : f32 to vector<2x1xf32>
    %504 = arith.select %114, %502, %503 : vector<2x1xi1>, vector<2x1xf32>
    %505 = vector.broadcast %504 : vector<2x1xf32> to vector<2x352xf32>
    %506 = arith.mulf %505, %63 : vector<2x352xf32>
    %507 = arith.addf %491, %506 : vector<2x352xf32>
    %c45 = arith.constant 45 : index
    %508 = memref.load %arg1[%c45] : memref<98xf32, #tpu.memory_space<smem>>
    %c94 = arith.constant 94 : index
    %509 = memref.load %arg1[%c94] : memref<98xf32, #tpu.memory_space<smem>>
    %510 = vector.broadcast %508 : f32 to vector<2x1xf32>
    %511 = vector.broadcast %509 : f32 to vector<2x1xf32>
    %512 = arith.select %114, %510, %511 : vector<2x1xi1>, vector<2x1xf32>
    %513 = vector.broadcast %512 : vector<2x1xf32> to vector<2x352xf32>
    %514 = arith.mulf %513, %75 : vector<2x352xf32>
    %515 = arith.addf %499, %514 : vector<2x352xf32>
    %c46 = arith.constant 46 : index
    %516 = memref.load %arg1[%c46] : memref<98xf32, #tpu.memory_space<smem>>
    %c95 = arith.constant 95 : index
    %517 = memref.load %arg1[%c95] : memref<98xf32, #tpu.memory_space<smem>>
    %518 = vector.broadcast %516 : f32 to vector<2x1xf32>
    %519 = vector.broadcast %517 : f32 to vector<2x1xf32>
    %520 = arith.select %114, %518, %519 : vector<2x1xi1>, vector<2x1xf32>
    %521 = vector.broadcast %520 : vector<2x1xf32> to vector<2x352xf32>
    %522 = arith.mulf %521, %87 : vector<2x352xf32>
    %523 = arith.addf %507, %522 : vector<2x352xf32>
    %c47 = arith.constant 47 : index
    %524 = memref.load %arg1[%c47] : memref<98xf32, #tpu.memory_space<smem>>
    %c96 = arith.constant 96 : index
    %525 = memref.load %arg1[%c96] : memref<98xf32, #tpu.memory_space<smem>>
    %526 = vector.broadcast %524 : f32 to vector<2x1xf32>
    %527 = vector.broadcast %525 : f32 to vector<2x1xf32>
    %528 = arith.select %114, %526, %527 : vector<2x1xi1>, vector<2x1xf32>
    %529 = vector.broadcast %528 : vector<2x1xf32> to vector<2x352xf32>
    %530 = arith.mulf %529, %99 : vector<2x352xf32>
    %531 = arith.addf %515, %530 : vector<2x352xf32>
    %c48 = arith.constant 48 : index
    %532 = memref.load %arg1[%c48] : memref<98xf32, #tpu.memory_space<smem>>
    %c97 = arith.constant 97 : index
    %533 = memref.load %arg1[%c97] : memref<98xf32, #tpu.memory_space<smem>>
    %534 = vector.broadcast %532 : f32 to vector<2x1xf32>
    %535 = vector.broadcast %533 : f32 to vector<2x1xf32>
    %536 = arith.select %114, %534, %535 : vector<2x1xi1>, vector<2x1xf32>
    %537 = vector.broadcast %536 : vector<2x1xf32> to vector<2x352xf32>
    %538 = arith.mulf %537, %111 : vector<2x352xf32>
    %539 = arith.addf %523, %538 : vector<2x352xf32>
    %540 = arith.addf %539, %531 : vector<2x352xf32>
    %541 = vector.extract_strided_slice %540 {offsets = [0, 96], sizes = [2, 256], strides = [1, 1]} : vector<2x352xf32> to vector<2x256xf32>
    %542 = arith.addf %481, %541 : vector<2x256xf32>
    %543 = vector.extract_strided_slice %542 {offsets = [0, 0], sizes = [1, 256], strides = [1, 1]} : vector<2x256xf32> to vector<1x256xf32>
    %544 = vector.extract_strided_slice %542 {offsets = [1, 0], sizes = [1, 256], strides = [1, 1]} : vector<2x256xf32> to vector<1x256xf32>
    %545 = arith.addf %543, %544 : vector<1x256xf32>
    %546 = arith.negf %545 : vector<1x256xf32>
    %547 = math.exp %546 : vector<1x256xf32>
    %cst_55 = arith.constant 1.000000e+00 : f32
    %548 = vector.broadcast %cst_55 : f32 to vector<1x256xf32>
    %549 = arith.addf %548, %547 : vector<1x256xf32>
    %550 = arith.divf %548, %549 : vector<1x256xf32>
    %551 = vector.shape_cast %550 : vector<1x256xf32> to vector<1x1x256xf32>
    %552 = vector.broadcast %551 : vector<1x1x256xf32> to vector<1x4x256xf32>
    %553 = arith.mulf %0, %552 : vector<1x4x256xf32>
    %c0_56 = arith.constant 0 : index
    %c0_57 = arith.constant 0 : index
    %c0_58 = arith.constant 0 : index
    %554 = vector.load %arg3[%c0_56, %c0_57, %c0_58] : memref<1x4x256xf32, #tpu.memory_space<vmem>>, vector<1x4x256xf32>
    tpu.vector_store %arg3[%c0_56, %c0_57, %c0_58], %553 {strides = array<i32>} : memref<1x4x256xf32, #tpu.memory_space<vmem>>, vector<1x4x256xf32>,
    return
  }
  func.func @transform_0(%arg0: i32) -> i32 {
    %c0_i32 = arith.constant 0 : i32
    %c0_i32_0 = arith.constant 0 : i32
    return %c0_i32 : i32
  }
  func.func @transform_1(%arg0: i32) -> (i32, i32, i32) {
    %c0_i32 = arith.constant 0 : i32
    %c0_i32_0 = arith.constant 0 : i32
    %c0_i32_1 = arith.constant 0 : i32
    return %arg0, %c0_i32, %c0_i32_0 : i32, i32, i32
  }
  func.func @transform_2(%arg0: i32) -> (i32, i32, i32) {
    %c0_i32 = arith.constant 0 : i32
    %c0_i32_0 = arith.constant 0 : i32
    %c0_i32_1 = arith.constant 0 : i32
    return %arg0, %c0_i32, %c0_i32_0 : i32, i32, i32
  }
}

</mosaic_0001>

<llo_original>
// kernel: tpu_custom_call.1
$region0: #{tpu_custom_call.1}
  #allocation0 [shape = 'u32[]', space=smem, size = 0x4, offset = 0x4, fixed_abs, tag = 'smem constant byte address 0x4 - core index']
  #allocation1 [shape = 'u32[144,128]{1,0:T(1,128)}', space=vmem, size = 0x12000, scoped, tag = 'internal scratch']
  %s0 = inlined_call_operand.hbm [shape: f32[98], index: 0, kind: input, shape index: {}]
  %s1 = inlined_call_operand.hbm [shape: f32[2,4,256], index: 1, kind: input, shape index: {}]
  %s2 = inlined_call_operand.hbm [shape: f32[2,4,256], index: 2, kind: output, shape index: {}]
  %s3 = sld [smem:[#allocation0]]
  $region49: #{tpu_custom_call.1} parent=0
    _
  %s5 = ssub.s32 1, %s3
  %s6 = scalar_select 0, %s5, %s3
  $region1: #{tpu_custom_call.1} parent=0
    #allocation2 [shape = 'u8[512]{0}', space=smem, size = 0x200, scoped, tag = 'input window, operand 0, single buffered']
    #allocation3 [shape = 's32[2]{0}', space=sflag, size = 0x8, scoped, tag = 'scoped memory for tpu_custom_call.1']
    #allocation4 [shape = 's32[2]{0}', space=sflag, size = 0x8, scoped, tag = 'scoped memory for tpu_custom_call.1']
    #allocation5 [shape = 's32[2]{0}', space=sflag, size = 0x8, scoped, tag = 'scoped memory for tpu_custom_call.1']
    #allocation6 [shape = 'u8[8192]{0}', space=vmem, size = 0x2000, scoped, tag = 'input window, operand 1']
    #allocation7 [shape = 'u8[8192]{0}', space=vmem, size = 0x2000, scoped, tag = 'output window, operand 0']
    %7 = vsyncpa [#allocation5], 0
    %8 = vsyncpa [#allocation3], 0
    %s9 = scalar_lea.sflag [#allocation3], 1
    %10 = vsyncpa %s9, 0
    %11 = vsyncpa [#allocation4], 0
    %s12 = scalar_lea.sflag [#allocation4], 1
    %13 = vsyncpa %s12, 0
    loop: start=0, step=1, limit=4
    $region2: #{tpu_custom_call.1} parent=1 // loop_pre_header
      _
    $region3: #{tpu_custom_call.1} parent=1 // loop_header
      %s15 = sphi 0, %s19
      %p16 = scmp.ge.s32.totalorder %s15, 4
      %s23 = sphi 0, %s23
      %s25 = sphi 0, %s23
      %s26 = sphi 0, %s25
      %s40 = sphi 0, %s26
      %s46 = sphi 0, %s48
      %s49 = sphi 0, %s46
      %s50 = sphi 0, %s49
      %s66 = sphi 0, %s50
      %s72 = sphi 0, %s74
      %s75 = sphi 0, %s72
      %s76 = sphi 0, %s75
      %s92 = sphi 0, %s76
    $region4: #{tpu_custom_call.1} parent=1 // loop_header_branch
      %18 = sbr.rel (%p16) target = $region8
    $region5: #{tpu_custom_call.1} parent=1 // loop_body
      %s20 = ssub.s32 %s15, 1
      %s21 = ssub.s32 %s15, 2
      %s22 = sadd.s32 %s15, 1
      %s24 = sadd.s32 %s23, 1
      %p27 = scmp.eq.s32.totalorder %s15, 1
      %p28 = scmp.ne.s32.totalorder %s23, %s25
      %p29 = scmp.eq.s32.totalorder %s15, 0
      %p30 = por %p28, %p29
      %p31 = scmp.ne.s32.totalorder %s23, %s25
      %p32 = scmp.eq.s32.totalorder %s20, 1
      %p33 = por %p31, %p32
      %p34 = scmp.ne.s32.totalorder %s25, %s26
      %p35 = scmp.eq.s32.totalorder %s20, 0
      %p36 = por %p34, %p35
      %p37 = scmp.ne.s32.totalorder %s25, %s26
      %p38 = scmp.eq.s32.totalorder %s21, 1
      %p39 = por %p37, %p38
      %p41 = scmp.ne.s32.totalorder %s26, %s40
      %p42 = scmp.eq.s32.totalorder %s21, 0
      %p43 = por %p41, %p42
      %s44 = ssub.s32 %s15, %s22
      %p45 = scmp.eq.s32.totalorder %s44, 0
      %s47 = sadd.s32 %s46, 1
      %s48 = scalar_select %p45, %s46, %s47
      %p51 = pneg %p45
      %p52 = scmp.eq.s32.totalorder %s15, 1
      %p53 = por %p51, %p52
      %p54 = scmp.ne.s32.totalorder %s46, %s49
      %p55 = scmp.eq.s32.totalorder %s15, 0
      %p56 = por %p54, %p55
      %p57 = scmp.ne.s32.totalorder %s46, %s49
      %p58 = scmp.eq.s32.totalorder %s20, 1
      %p59 = por %p57, %p58
      %p60 = scmp.ne.s32.totalorder %s49, %s50
      %p61 = scmp.eq.s32.totalorder %s20, 0
      %p62 = por %p60, %p61
      %p63 = scmp.ne.s32.totalorder %s49, %s50
      %p64 = scmp.eq.s32.totalorder %s21, 1
      %p65 = por %p63, %p64
      %p67 = scmp.ne.s32.totalorder %s50, %s66
      %p68 = scmp.eq.s32.totalorder %s21, 0
      %p69 = por %p67, %p68
      %s70 = ssub.s32 %s15, %s22
      %p71 = scmp.eq.s32.totalorder %s70, 0
      %s73 = sadd.s32 %s72, 1
      %s74 = scalar_select %p71, %s72, %s73
      %p77 = pneg %p71
      %p78 = scmp.eq.s32.totalorder %s15, 1
      %p79 = por %p77, %p78
      %p80 = scmp.ne.s32.totalorder %s72, %s75
      %p81 = scmp.eq.s32.totalorder %s15, 0
      %p82 = por %p80, %p81
      %p83 = scmp.ne.s32.totalorder %s72, %s75
      %p84 = scmp.eq.s32.totalorder %s20, 1
      %p85 = por %p83, %p84
      %p86 = scmp.ne.s32.totalorder %s75, %s76
      %p87 = scmp.eq.s32.totalorder %s20, 0
      %p88 = por %p86, %p87
      %p89 = scmp.ne.s32.totalorder %s75, %s76
      %p90 = scmp.eq.s32.totalorder %s21, 1
      %p91 = por %p89, %p90
      %p93 = scmp.ne.s32.totalorder %s76, %s92
      %p94 = scmp.eq.s32.totalorder %s21, 0
      %p95 = por %p93, %p94
      %p96 = scmp.le.s32.totalorder 1, %s15
      %p97 = scmp.lt.s32.totalorder %s15, 3
      %p98 = pnand %p96, %p97
      %p99 = pneg %p98
      // Predicated region
      $region9: #{tpu_custom_call.1} parent=5 // pred_check
        _
      $region10: #{tpu_custom_call.1} parent=5 // pred_check_branch
        %101 = sbr.rel (%p98) target = $region12
      $region11: #{tpu_custom_call.1} parent=5 // pred_region
        %s102 = ssub.s32 %s15, 1
        // Predicated region
        $region13: #{tpu_custom_call.1} parent=11 // pred_check
          %p103 = pneg %p36
        $region14: #{tpu_custom_call.1} parent=11 // pred_check_branch
          %105 = sbr.rel (%p103) target = $region16
        $region15: #{tpu_custom_call.1} parent=11 // pred_region
          %s107 = ssub.s32 16, 16
          %108 = vsyncadd [#allocation5], %s107
          %111 = dma.hbm_to_smem %s0, 16, [#allocation2], [#allocation5]
        $region16: #{tpu_custom_call.1} parent=11 // pred_fallthru
          _
      $region12: #{tpu_custom_call.1} parent=5 // pred_fallthru
        _
      %p112 = scmp.lt.s32.totalorder %s15, 2
      // Predicated region
      $region17: #{tpu_custom_call.1} parent=5 // pred_check
        %p113 = pneg %p112
      $region18: #{tpu_custom_call.1} parent=5 // pred_check_branch
        %115 = sbr.rel (%p113) target = $region20
      $region19: #{tpu_custom_call.1} parent=5 // pred_region
        // Predicated region
        $region21: #{tpu_custom_call.1} parent=19 // pred_check
          %p116 = pneg %p56
        $region22: #{tpu_custom_call.1} parent=19 // pred_check_branch
          %118 = sbr.rel (%p116) target = $region24
        $region23: #{tpu_custom_call.1} parent=19 // pred_region
          %s119 = sand.u32 %s46, 1
          %s120 = scalar_lea.sflag [#allocation3], %s119
          %s121 = sand.u32 %s46, 1
          %s122 = smul.addr %s121, 8
          %s123 = scalar_lea.vmem [#allocation6], %s122
          %s125 = ssub.s32 128, 128
          %126 = vsyncadd %s120, %s125
          %s127 = smul.addr %s15, 2
          %s128 = smul.addr %s127, 64
          %s129 = scalar_lea.hbm %s1, %s128
          %s131 = sshll.u32 %s123, 4
          %s132 = int_to_ptr.vmem [resolvable:$true] %s131
          %134 = dma.hbm_to_vmem [thread:$0]  %s129, 128, %s132, %s120
        $region24: #{tpu_custom_call.1} parent=19 // pred_fallthru
          _
      $region20: #{tpu_custom_call.1} parent=5 // pred_fallthru
        _
      %p135 = scmp.le.s32.totalorder 1, %s15
      %p136 = scmp.lt.s32.totalorder %s15, 3
      %p137 = pnand %p135, %p136
      %p138 = pneg %p137
      // Predicated region
      $region25: #{tpu_custom_call.1} parent=5 // pred_check
        _
      $region26: #{tpu_custom_call.1} parent=5 // pred_check_branch
        %140 = sbr.rel (%p137) target = $region28
      $region27: #{tpu_custom_call.1} parent=5 // pred_region
        %s141 = ssub.s32 %s15, 1
        // Predicated region
        $region29: #{tpu_custom_call.1} parent=27 // pred_check
          %p142 = pneg %p36
        $region30: #{tpu_custom_call.1} parent=27 // pred_check_branch
          %144 = sbr.rel (%p142) target = $region32
        $region31: #{tpu_custom_call.1} parent=27 // pred_region
          %145 = dma.done [#allocation5], 16
        $region32: #{tpu_custom_call.1} parent=27 // pred_fallthru
          _
        %s146 = sand.u32 %s49, 1
        %s147 = scalar_lea.sflag [#allocation3], %s146
        %s148 = sand.u32 %s49, 1
        %s149 = smul.addr %s148, 8
        %s150 = scalar_lea.vmem [#allocation6], %s149
        // Predicated region
        $region33: #{tpu_custom_call.1} parent=27 // pred_check
          %p151 = pneg %p62
        $region34: #{tpu_custom_call.1} parent=27 // pred_check_branch
          %153 = sbr.rel (%p151) target = $region36
        $region35: #{tpu_custom_call.1} parent=27 // pred_region
          %154 = dma.done %s147, 128
        $region36: #{tpu_custom_call.1} parent=27 // pred_fallthru
          _
        %155 = sfence
        %p156 = pneg %p36
        %p157 = pneg %p33
        %s158 = sand.u32 %s49, 1
        %s159 = scalar_lea.sflag [#allocation3], %s158
        %s160 = sand.u32 %s49, 1
        %s161 = smul.addr %s160, 8
        %s162 = scalar_lea.vmem [#allocation6], %s161
        %p163 = pneg %p62
        %p164 = pneg %p59
        %p165 = pneg %p88
        %p166 = pneg %p85
        %s167 = sand.u32 %s75, 1
        %s168 = scalar_lea.sflag [#allocation4], %s167
        %s169 = sand.u32 %s75, 1
        %s170 = smul.addr %s169, 8
        %s171 = scalar_lea.vmem [#allocation7], %s170
        %v172 = vld [vmem:[%s150] sm:$0xff]
        %v174 = vcombine.high %v172, %v172
        %vm176 = vcmask 1043456
        %v177 = vsel %vm176, %v172, 0.0
        %v178 = vrot.slane %v177, 4
        %v179 = vadd.f32 %v177, %v178
        %v180 = vrot.slane %v179, 2
        %v181 = vadd.f32 %v179, %v180
        %v182 = vrot.slane %v181, 1
        %v183 = vadd.f32 %v181, %v182
        %v184 = vsel %vm176, %v174, 0.0
        %v185 = vrot.slane %v184, 4
        %v186 = vadd.f32 %v184, %v185
        %v187 = vrot.slane %v186, 2
        %v188 = vadd.f32 %v186, %v187
        %v189 = vrot.slane %v188, 1
        %v190 = vadd.f32 %v188, %v189
        %v191 = vmul.f32 %v183, 0.25
        %v192 = vmul.f32 %v190, 0.25
        %v193 = vsel %vm176, %v172, -inf
        %v194 = vrot.slane %v193, 4
        %v195 = vmax.f32 %v193, %v194
        %v196 = vrot.slane %v195, 2
        %v197 = vmax.f32 %v195, %v196
        %v198 = vrot.slane %v197, 1
        %v199 = vmax.f32 %v197, %v198
        %v200 = vsel %vm176, %v174, -inf
        %v201 = vrot.slane %v200, 4
        %v202 = vmax.f32 %v200, %v201
        %v203 = vrot.slane %v202, 2
        %v204 = vmax.f32 %v202, %v203
        %v205 = vrot.slane %v204, 1
        %v206 = vmax.f32 %v204, %v205
        %vm207 = vcmask 1040384
        %v208 = vsel %vm207, %v191, %v199
        %v209 = vsel %vm207, %v192, %v206
        %212 = vrot.lane.b32.xlu0 %v208, 51
        %v213 = vpop.permute.xlu0 %212
        %214 = vrot.lane.b32.xlu0 %v209, 51
        %v215 = vpop.permute.xlu0 %214
        %vm216 = vcmask 416768
        %v217 = vsel %vm216, %v213, %v215
        %v221 = vsel %vm216, 0.0, %v213
        %v222 = vsel %vm216, %v215, 0.0
        %v223 = vlaneseq
        %v224 = vand.u32 %v223, 127
        %v225 = vadd.s32 %v224, 128
        %v226 = vadd.s32 %v224, 256
        %vm227 = vcmp.lt.s32.totalorder %v224, 0
        %v228 = vsub.s32 0, %v224
        %v229 = vsel %vm227, %v228, %v224
        %v230 = vshrl.u32 %v229, 4
        %v231 = vand.u32 %v229, 15
        %v232 = vsub.s32 0, %v231
        %v233 = vsel %vm227, %v232, %v231
        %vm234 = vcmp.lt.s32.totalorder %v225, 0
        %v235 = vsub.s32 0, %v225
        %v236 = vsel %vm234, %v235, %v225
        %v237 = vshrl.u32 %v236, 4
        %v238 = vand.u32 %v236, 15
        %v239 = vsub.s32 0, %v238
        %v240 = vsel %vm234, %v239, %v238
        %vm241 = vcmp.lt.s32.totalorder %v226, 0
        %v242 = vsub.s32 0, %v226
        %v243 = vsel %vm241, %v242, %v226
        %v244 = vshrl.u32 %v243, 4
        %v245 = vand.u32 %v243, 15
        %v246 = vsub.s32 0, %v245
        %v247 = vsel %vm241, %v246, %v245
        %vm248 = vcmp.ne.s32.totalorder %v233, 0
        %vm249 = vcmp.ne.s32.totalorder %v240, 0
        %vm250 = vcmp.ne.s32.totalorder %v247, 0
        %vm251 = vcmp.lt.s32.totalorder %v233, 0
        %vm252 = vcmp.lt.s32.totalorder %v240, 0
        %vm253 = vcmp.lt.s32.totalorder %v247, 0
        %vm254 = vmand %vm251, %vm248
        %vm255 = vmand %vm252, %vm249
        %vm256 = vmand %vm253, %vm250
        %v257 = vadd.s32 %v233, 16
        %v258 = vadd.s32 %v240, 16
        %v259 = vadd.s32 %v247, 16
        %v260 = vsel %vm254, %v257, %v233
        %v261 = vsel %vm255, %v258, %v240
        %v262 = vsel %vm256, %v259, %v247
        %v263 = vadd.s32 %v260, 4294967293
        %v264 = vadd.s32 %v261, 4294967293
        %v265 = vadd.s32 %v262, 4294967293
        %vm266 = vcmp.ge.s32.totalorder %v263, 0
        %vm267 = vcmp.ge.s32.totalorder %v264, 0
        %vm268 = vcmp.ge.s32.totalorder %v265, 0
        %vm269 = vcmp.lt.s32.totalorder %v263, 16
        %vm270 = vcmp.lt.s32.totalorder %v264, 16
        %vm271 = vcmp.lt.s32.totalorder %v265, 16
        %vm272 = vmand %vm266, %vm269
        %vm273 = vmand %vm267, %vm270
        %vm274 = vmand %vm268, %vm271
        %v275 = vsel %vm272, %v221, 0.0
        %v276 = vsel %vm273, %v217, 0.0
        %v277 = vsel %vm274, %v222, 0.0
        %v278 = vadd.s32 %v260, 4294967294
        %v279 = vadd.s32 %v261, 4294967294
        %v280 = vadd.s32 %v262, 4294967294
        %vm281 = vcmp.ge.s32.totalorder %v278, 0
        %vm282 = vcmp.ge.s32.totalorder %v279, 0
        %vm283 = vcmp.ge.s32.totalorder %v280, 0
        %vm284 = vcmp.lt.s32.totalorder %v278, 16
        %vm285 = vcmp.lt.s32.totalorder %v279, 16
        %vm286 = vcmp.lt.s32.totalorder %v280, 16
        %vm287 = vmand %vm281, %vm284
        %vm288 = vmand %vm282, %vm285
        %vm289 = vmand %vm283, %vm286
        %292 = vrot.lane.b32.xlu0 %v221, 127
        %v293 = vpop.permute.xlu0 %292
        %294 = vrot.lane.b32.xlu0 %v217, 127
        %v295 = vpop.permute.xlu0 %294
        %296 = vrot.lane.b32.xlu0 %v222, 127
        %v297 = vpop.permute.xlu0 %296
        %vm298 = vcmask 1039360
        %v299 = vsel %vm298, %v293, %v295
        %v300 = vsel %vm298, %v295, %v297
        %v304 = vsel %vm287, %v299, 0.0
        %v305 = vsel %vm288, %v300, 0.0
        %v306 = vsel %vm289, %v297, 0.0
        %v307 = vadd.s32 %v260, 4294967295
        %v308 = vadd.s32 %v261, 4294967295
        %v309 = vadd.s32 %v262, 4294967295
        %vm310 = vcmp.ge.s32.totalorder %v307, 0
        %vm311 = vcmp.ge.s32.totalorder %v308, 0
        %vm312 = vcmp.ge.s32.totalorder %v309, 0
        %vm313 = vcmp.lt.s32.totalorder %v307, 16
        %vm314 = vcmp.lt.s32.totalorder %v308, 16
        %vm315 = vcmp.lt.s32.totalorder %v309, 16
        %vm316 = vmand %vm310, %vm313
        %vm317 = vmand %vm311, %vm314
        %vm318 = vmand %vm312, %vm315
        %319 = vrot.lane.b32.xlu0 %v221, 126
        %v320 = vpop.permute.xlu0 %319
        %321 = vrot.lane.b32.xlu0 %v217, 126
        %v322 = vpop.permute.xlu0 %321
        %323 = vrot.lane.b32.xlu0 %v222, 126
        %v324 = vpop.permute.xlu0 %323
        %vm325 = vcmask 1031168
        %v326 = vsel %vm325, %v320, %v322
        %v327 = vsel %vm325, %v322, %v324
        %v331 = vsel %vm316, %v326, 0.0
        %v332 = vsel %vm317, %v327, 0.0
        %v333 = vsel %vm318, %v324, 0.0
        %vm334 = vcmp.ge.s32.totalorder %v260, 0
        %vm335 = vcmp.ge.s32.totalorder %v261, 0
        %vm336 = vcmp.ge.s32.totalorder %v262, 0
        %vm337 = vcmp.lt.s32.totalorder %v260, 16
        %vm338 = vcmp.lt.s32.totalorder %v261, 16
        %vm339 = vcmp.lt.s32.totalorder %v262, 16
        %vm340 = vmand %vm334, %vm337
        %vm341 = vmand %vm335, %vm338
        %vm342 = vmand %vm336, %vm339
        %343 = vrot.lane.b32.xlu0 %v221, 125
        %v344 = vpop.permute.xlu0 %343
        %345 = vrot.lane.b32.xlu0 %v217, 125
        %v346 = vpop.permute.xlu0 %345
        %347 = vrot.lane.b32.xlu0 %v222, 125
        %v348 = vpop.permute.xlu0 %347
        %vm349 = vcmask 1022976
        %v350 = vsel %vm349, %v344, %v346
        %v351 = vsel %vm349, %v346, %v348
        %v355 = vsel %vm340, %v350, 0.0
        %v356 = vsel %vm341, %v351, 0.0
        %v357 = vsel %vm342, %v348, 0.0
        %v358 = vadd.s32 %v260, 1
        %v359 = vadd.s32 %v261, 1
        %v360 = vadd.s32 %v262, 1
        %vm361 = vcmp.ge.s32.totalorder %v358, 0
        %vm362 = vcmp.ge.s32.totalorder %v359, 0
        %vm363 = vcmp.ge.s32.totalorder %v360, 0
        %vm364 = vcmp.lt.s32.totalorder %v358, 16
        %vm365 = vcmp.lt.s32.totalorder %v359, 16
        %vm366 = vcmp.lt.s32.totalorder %v360, 16
        %vm367 = vmand %vm361, %vm364
        %vm368 = vmand %vm362, %vm365
        %vm369 = vmand %vm363, %vm366
        %370 = vrot.lane.b32.xlu0 %v221, 124
        %v371 = vpop.permute.xlu0 %370
        %372 = vrot.lane.b32.xlu0 %v217, 124
        %v373 = vpop.permute.xlu0 %372
        %374 = vrot.lane.b32.xlu0 %v222, 124
        %v375 = vpop.permute.xlu0 %374
        %vm376 = vcmask 1014784
        %v377 = vsel %vm376, %v371, %v373
        %v378 = vsel %vm376, %v373, %v375
        %v382 = vsel %vm367, %v377, 0.0
        %v383 = vsel %vm368, %v378, 0.0
        %v384 = vsel %vm369, %v375, 0.0
        %v385 = vadd.s32 %v260, 2
        %v386 = vadd.s32 %v261, 2
        %v387 = vadd.s32 %v262, 2
        %vm388 = vcmp.ge.s32.totalorder %v385, 0
        %vm389 = vcmp.ge.s32.totalorder %v386, 0
        %vm390 = vcmp.ge.s32.totalorder %v387, 0
        %vm391 = vcmp.lt.s32.totalorder %v385, 16
        %vm392 = vcmp.lt.s32.totalorder %v386, 16
        %vm393 = vcmp.lt.s32.totalorder %v387, 16
        %vm394 = vmand %vm388, %vm391
        %vm395 = vmand %vm389, %vm392
        %vm396 = vmand %vm390, %vm393
        %397 = vrot.lane.b32.xlu0 %v221, 123
        %v398 = vpop.permute.xlu0 %397
        %399 = vrot.lane.b32.xlu0 %v217, 123
        %v400 = vpop.permute.xlu0 %399
        %401 = vrot.lane.b32.xlu0 %v222, 123
        %v402 = vpop.permute.xlu0 %401
        %vm403 = vcmask 1006592
        %v404 = vsel %vm403, %v398, %v400
        %v405 = vsel %vm403, %v400, %v402
        %v409 = vsel %vm394, %v404, 0.0
        %v410 = vsel %vm395, %v405, 0.0
        %v411 = vsel %vm396, %v402, 0.0
        %v412 = vadd.s32 %v260, 3
        %v413 = vadd.s32 %v261, 3
        %v414 = vadd.s32 %v262, 3
        %vm415 = vcmp.ge.s32.totalorder %v412, 0
        %vm416 = vcmp.ge.s32.totalorder %v413, 0
        %vm417 = vcmp.ge.s32.totalorder %v414, 0
        %vm418 = vcmp.lt.s32.totalorder %v412, 16
        %vm419 = vcmp.lt.s32.totalorder %v413, 16
        %vm420 = vcmp.lt.s32.totalorder %v414, 16
        %vm421 = vmand %vm415, %vm418
        %vm422 = vmand %vm416, %vm419
        %vm423 = vmand %vm417, %vm420
        %424 = vrot.lane.b32.xlu0 %v221, 122
        %v425 = vpop.permute.xlu0 %424
        %426 = vrot.lane.b32.xlu0 %v217, 122
        %v427 = vpop.permute.xlu0 %426
        %428 = vrot.lane.b32.xlu0 %v222, 122
        %v429 = vpop.permute.xlu0 %428
        %vm430 = vcmask 998400
        %v431 = vsel %vm430, %v425, %v427
        %v432 = vsel %vm430, %v427, %v429
        %v436 = vsel %vm421, %v431, 0.0
        %v437 = vsel %vm422, %v432, 0.0
        %v438 = vsel %vm423, %v429, 0.0
        %v439 = vlaneseq
        %v440 = vshrl.u32 %v439, 7
        %vm441 = vcmp.lt.s32.totalorder %v440, 1
        %s442 = sld [smem:[#allocation2]]
        %s443 = sld [smem:[#allocation2 + $0x31]]
        %v444 = vstv %s442
        %v445 = vstv %s443
        %v446 = vsel %vm441, %v444, %v445
        %v447 = vmul.f32 %v446, %v275
        %v448 = vmul.f32 %v446, %v276
        %v449 = vadd.f32 %v447, 0.0
        %v450 = vadd.f32 %v448, 0.0
        %s451 = sld [smem:[#allocation2 + $0x1]]
        %s452 = sld [smem:[#allocation2 + $0x32]]
        %v453 = vstv %s451
        %v454 = vstv %s452
        %v455 = vsel %vm441, %v453, %v454
        %v456 = vmul.f32 %v455, %v304
        %v457 = vmul.f32 %v455, %v305
        %v458 = vadd.f32 %v456, 0.0
        %v459 = vadd.f32 %v457, 0.0
        %s460 = sld [smem:[#allocation2 + $0x2]]
        %s461 = sld [smem:[#allocation2 + $0x33]]
        %v462 = vstv %s460
        %v463 = vstv %s461
        %v464 = vsel %vm441, %v462, %v463
        %v465 = vmul.f32 %v464, %v331
        %v466 = vmul.f32 %v464, %v332
        %v467 = vadd.f32 %v449, %v465
        %v468 = vadd.f32 %v450, %v466
        %s469 = sld [smem:[#allocation2 + $0x3]]
        %s470 = sld [smem:[#allocation2 + $0x34]]
        %v471 = vstv %s469
        %v472 = vstv %s470
        %v473 = vsel %vm441, %v471, %v472
        %v474 = vmul.f32 %v473, %v355
        %v475 = vmul.f32 %v473, %v356
        %v476 = vadd.f32 %v458, %v474
        %v477 = vadd.f32 %v459, %v475
        %s478 = sld [smem:[#allocation2 + $0x4]]
        %s479 = sld [smem:[#allocation2 + $0x35]]
        %v480 = vstv %s478
        %v481 = vstv %s479
        %v482 = vsel %vm441, %v480, %v481
        %v483 = vmul.f32 %v482, %v382
        %v484 = vmul.f32 %v482, %v383
        %v485 = vadd.f32 %v467, %v483
        %v486 = vadd.f32 %v468, %v484
        %s487 = sld [smem:[#allocation2 + $0x5]]
        %s488 = sld [smem:[#allocation2 + $0x36]]
        %v489 = vstv %s487
        %v490 = vstv %s488
        %v491 = vsel %vm441, %v489, %v490
        %v492 = vmul.f32 %v491, %v409
        %v493 = vmul.f32 %v491, %v410
        %v494 = vadd.f32 %v476, %v492
        %v495 = vadd.f32 %v477, %v493
        %s496 = sld [smem:[#allocation2 + $0x6]]
        %s497 = sld [smem:[#allocation2 + $0x37]]
        %v498 = vstv %s496
        %v499 = vstv %s497
        %v500 = vsel %vm441, %v498, %v499
        %v501 = vmul.f32 %v500, %v436
        %v502 = vmul.f32 %v500, %v437
        %v503 = vadd.f32 %v485, %v501
        %v504 = vadd.f32 %v486, %v502
        %v505 = vadd.f32 %v503, %v494
        %v506 = vadd.f32 %v504, %v495
        %v507 = vadd.f32 %v505, 0.0
        %v508 = vadd.f32 %v506, 0.0
        %s509 = sld [smem:[#allocation2 + $0x7]]
        %s510 = sld [smem:[#allocation2 + $0x38]]
        %v511 = vstv %s509
        %v512 = vstv %s510
        %v513 = vsel %vm441, %v511, %v512
        %v514 = vmul.f32 %v513, %v275
        %v515 = vmul.f32 %v513, %v276
        %v516 = vmul.f32 %v513, %v277
        %v517 = vadd.f32 %v514, 0.0
        %v518 = vadd.f32 %v515, 0.0
        %v519 = vadd.f32 %v516, 0.0
        %s520 = sld [smem:[#allocation2 + $0x8]]
        %s521 = sld [smem:[#allocation2 + $0x39]]
        %v522 = vstv %s520
        %v523 = vstv %s521
        %v524 = vsel %vm441, %v522, %v523
        %v525 = vmul.f32 %v524, %v304
        %v526 = vmul.f32 %v524, %v305
        %v527 = vmul.f32 %v524, %v306
        %v528 = vadd.f32 %v525, 0.0
        %v529 = vadd.f32 %v526, 0.0
        %v530 = vadd.f32 %v527, 0.0
        %s531 = sld [smem:[#allocation2 + $0x9]]
        %s532 = sld [smem:[#allocation2 + $0x3a]]
        %v533 = vstv %s531
        %v534 = vstv %s532
        %v535 = vsel %vm441, %v533, %v534
        %v536 = vmul.f32 %v535, %v331
        %v537 = vmul.f32 %v535, %v332
        %v538 = vmul.f32 %v535, %v333
        %v539 = vadd.f32 %v517, %v536
        %v540 = vadd.f32 %v518, %v537
        %v541 = vadd.f32 %v519, %v538
        %s542 = sld [smem:[#allocation2 + $0xa]]
        %s543 = sld [smem:[#allocation2 + $0x3b]]
        %v544 = vstv %s542
        %v545 = vstv %s543
        %v546 = vsel %vm441, %v544, %v545
        %v547 = vmul.f32 %v546, %v355
        %v548 = vmul.f32 %v546, %v356
        %v549 = vmul.f32 %v546, %v357
        %v550 = vadd.f32 %v528, %v547
        %v551 = vadd.f32 %v529, %v548
        %v552 = vadd.f32 %v530, %v549
        %s553 = sld [smem:[#allocation2 + $0xb]]
        %s554 = sld [smem:[#allocation2 + $0x3c]]
        %v555 = vstv %s553
        %v556 = vstv %s554
        %v557 = vsel %vm441, %v555, %v556
        %v558 = vmul.f32 %v557, %v382
        %v559 = vmul.f32 %v557, %v383
        %v560 = vmul.f32 %v557, %v384
        %v561 = vadd.f32 %v539, %v558
        %v562 = vadd.f32 %v540, %v559
        %v563 = vadd.f32 %v541, %v560
        %s564 = sld [smem:[#allocation2 + $0xc]]
        %s565 = sld [smem:[#allocation2 + $0x3d]]
        %v566 = vstv %s564
        %v567 = vstv %s565
        %v568 = vsel %vm441, %v566, %v567
        %v569 = vmul.f32 %v568, %v409
        %v570 = vmul.f32 %v568, %v410
        %v571 = vmul.f32 %v568, %v411
        %v572 = vadd.f32 %v550, %v569
        %v573 = vadd.f32 %v551, %v570
        %v574 = vadd.f32 %v552, %v571
        %s575 = sld [smem:[#allocation2 + $0xd]]
        %s576 = sld [smem:[#allocation2 + $0x3e]]
        %v577 = vstv %s575
        %v578 = vstv %s576
        %v579 = vsel %vm441, %v577, %v578
        %v580 = vmul.f32 %v579, %v436
        %v581 = vmul.f32 %v579, %v437
        %v582 = vmul.f32 %v579, %v438
        %v583 = vadd.f32 %v561, %v580
        %v584 = vadd.f32 %v562, %v581
        %v585 = vadd.f32 %v563, %v582
        %v586 = vadd.f32 %v583, %v572
        %v587 = vadd.f32 %v584, %v573
        %v588 = vadd.f32 %v585, %v574
        %592 = vrot.lane.b32.xlu0 %v586, 112
        %v593 = vpop.permute.xlu0 %592
        %594 = vrot.lane.b32.xlu0 %v587, 112
        %v595 = vpop.permute.xlu0 %594
        %596 = vrot.lane.b32.xlu0 %v588, 112
        %v597 = vpop.permute.xlu0 %596
        %vm598 = vcmask 916480
        %v599 = vsel %vm598, %v593, %v595
        %v600 = vsel %vm598, %v595, %v597
        %v603 = vadd.f32 %v507, %v599
        %v604 = vadd.f32 %v508, %v600
        %s605 = sld [smem:[#allocation2 + $0xe]]
        %s606 = sld [smem:[#allocation2 + $0x3f]]
        %v607 = vstv %s605
        %v608 = vstv %s606
        %v609 = vsel %vm441, %v607, %v608
        %v610 = vmul.f32 %v609, %v275
        %v611 = vmul.f32 %v609, %v276
        %v612 = vmul.f32 %v609, %v277
        %v613 = vadd.f32 %v610, 0.0
        %v614 = vadd.f32 %v611, 0.0
        %v615 = vadd.f32 %v612, 0.0
        %s616 = sld [smem:[#allocation2 + $0xf]]
        %s617 = sld [smem:[#allocation2 + $0x40]]
        %v618 = vstv %s616
        %v619 = vstv %s617
        %v620 = vsel %vm441, %v618, %v619
        %v621 = vmul.f32 %v620, %v304
        %v622 = vmul.f32 %v620, %v305
        %v623 = vmul.f32 %v620, %v306
        %v624 = vadd.f32 %v621, 0.0
        %v625 = vadd.f32 %v622, 0.0
        %v626 = vadd.f32 %v623, 0.0
        %s627 = sld [smem:[#allocation2 + $0x10]]
        %s628 = sld [smem:[#allocation2 + $0x41]]
        %v629 = vstv %s627
        %v630 = vstv %s628
        %v631 = vsel %vm441, %v629, %v630
        %v632 = vmul.f32 %v631, %v331
        %v633 = vmul.f32 %v631, %v332
        %v634 = vmul.f32 %v631, %v333
        %v635 = vadd.f32 %v613, %v632
        %v636 = vadd.f32 %v614, %v633
        %v637 = vadd.f32 %v615, %v634
        %s638 = sld [smem:[#allocation2 + $0x11]]
        %s639 = sld [smem:[#allocation2 + $0x42]]
        %v640 = vstv %s638
        %v641 = vstv %s639
        %v642 = vsel %vm441, %v640, %v641
        %v643 = vmul.f32 %v642, %v355
        %v644 = vmul.f32 %v642, %v356
        %v645 = vmul.f32 %v642, %v357
        %v646 = vadd.f32 %v624, %v643
        %v647 = vadd.f32 %v625, %v644
        %v648 = vadd.f32 %v626, %v645
        %s649 = sld [smem:[#allocation2 + $0x12]]
        %s650 = sld [smem:[#allocation2 + $0x43]]
        %v651 = vstv %s649
        %v652 = vstv %s650
        %v653 = vsel %vm441, %v651, %v652
        %v654 = vmul.f32 %v653, %v382
        %v655 = vmul.f32 %v653, %v383
        %v656 = vmul.f32 %v653, %v384
        %v657 = vadd.f32 %v635, %v654
        %v658 = vadd.f32 %v636, %v655
        %v659 = vadd.f32 %v637, %v656
        %s660 = sld [smem:[#allocation2 + $0x13]]
        %s661 = sld [smem:[#allocation2 + $0x44]]
        %v662 = vstv %s660
        %v663 = vstv %s661
        %v664 = vsel %vm441, %v662, %v663
        %v665 = vmul.f32 %v664, %v409
        %v666 = vmul.f32 %v664, %v410
        %v667 = vmul.f32 %v664, %v411
        %v668 = vadd.f32 %v646, %v665
        %v669 = vadd.f32 %v647, %v666
        %v670 = vadd.f32 %v648, %v667
        %s671 = sld [smem:[#allocation2 + $0x14]]
        %s672 = sld [smem:[#allocation2 + $0x45]]
        %v673 = vstv %s671
        %v674 = vstv %s672
        %v675 = vsel %vm441, %v673, %v674
        %v676 = vmul.f32 %v675, %v436
        %v677 = vmul.f32 %v675, %v437
        %v678 = vmul.f32 %v675, %v438
        %v679 = vadd.f32 %v657, %v676
        %v680 = vadd.f32 %v658, %v677
        %v681 = vadd.f32 %v659, %v678
        %v682 = vadd.f32 %v679, %v668
        %v683 = vadd.f32 %v680, %v669
        %v684 = vadd.f32 %v681, %v670
        %688 = vrot.lane.b32.xlu0 %v682, 96
        %v689 = vpop.permute.xlu0 %688
        %690 = vrot.lane.b32.xlu0 %v683, 96
        %v691 = vpop.permute.xlu0 %690
        %692 = vrot.lane.b32.xlu0 %v684, 96
        %v693 = vpop.permute.xlu0 %692
        %vm694 = vcmask 785408
        %v695 = vsel %vm694, %v689, %v691
        %v696 = vsel %vm694, %v691, %v693
        %v699 = vadd.f32 %v603, %v695
        %v700 = vadd.f32 %v604, %v696
        %s701 = sld [smem:[#allocation2 + $0x15]]
        %s702 = sld [smem:[#allocation2 + $0x46]]
        %v703 = vstv %s701
        %v704 = vstv %s702
        %v705 = vsel %vm441, %v703, %v704
        %v706 = vmul.f32 %v705, %v275
        %v707 = vmul.f32 %v705, %v276
        %v708 = vmul.f32 %v705, %v277
        %v709 = vadd.f32 %v706, 0.0
        %v710 = vadd.f32 %v707, 0.0
        %v711 = vadd.f32 %v708, 0.0
        %s712 = sld [smem:[#allocation2 + $0x16]]
        %s713 = sld [smem:[#allocation2 + $0x47]]
        %v714 = vstv %s712
        %v715 = vstv %s713
        %v716 = vsel %vm441, %v714, %v715
        %v717 = vmul.f32 %v716, %v304
        %v718 = vmul.f32 %v716, %v305
        %v719 = vmul.f32 %v716, %v306
        %v720 = vadd.f32 %v717, 0.0
        %v721 = vadd.f32 %v718, 0.0
        %v722 = vadd.f32 %v719, 0.0
        %s723 = sld [smem:[#allocation2 + $0x17]]
        %s724 = sld [smem:[#allocation2 + $0x48]]
        %v725 = vstv %s723
        %v726 = vstv %s724
        %v727 = vsel %vm441, %v725, %v726
        %v728 = vmul.f32 %v727, %v331
        %v729 = vmul.f32 %v727, %v332
        %v730 = vmul.f32 %v727, %v333
        %v731 = vadd.f32 %v709, %v728
        %v732 = vadd.f32 %v710, %v729
        %v733 = vadd.f32 %v711, %v730
        %s734 = sld [smem:[#allocation2 + $0x18]]
        %s735 = sld [smem:[#allocation2 + $0x49]]
        %v736 = vstv %s734
        %v737 = vstv %s735
        %v738 = vsel %vm441, %v736, %v737
        %v739 = vmul.f32 %v738, %v355
        %v740 = vmul.f32 %v738, %v356
        %v741 = vmul.f32 %v738, %v357
        %v742 = vadd.f32 %v720, %v739
        %v743 = vadd.f32 %v721, %v740
        %v744 = vadd.f32 %v722, %v741
        %s745 = sld [smem:[#allocation2 + $0x19]]
        %s746 = sld [smem:[#allocation2 + $0x4a]]
        %v747 = vstv %s745
        %v748 = vstv %s746
        %v749 = vsel %vm441, %v747, %v748
        %v750 = vmul.f32 %v749, %v382
        %v751 = vmul.f32 %v749, %v383
        %v752 = vmul.f32 %v749, %v384
        %v753 = vadd.f32 %v731, %v750
        %v754 = vadd.f32 %v732, %v751
        %v755 = vadd.f32 %v733, %v752
        %s756 = sld [smem:[#allocation2 + $0x1a]]
        %s757 = sld [smem:[#allocation2 + $0x4b]]
        %v758 = vstv %s756
        %v759 = vstv %s757
        %v760 = vsel %vm441, %v758, %v759
        %v761 = vmul.f32 %v760, %v409
        %v762 = vmul.f32 %v760, %v410
        %v763 = vmul.f32 %v760, %v411
        %v764 = vadd.f32 %v742, %v761
        %v765 = vadd.f32 %v743, %v762
        %v766 = vadd.f32 %v744, %v763
        %s767 = sld [smem:[#allocation2 + $0x1b]]
        %s768 = sld [smem:[#allocation2 + $0x4c]]
        %v769 = vstv %s767
        %v770 = vstv %s768
        %v771 = vsel %vm441, %v769, %v770
        %v772 = vmul.f32 %v771, %v436
        %v773 = vmul.f32 %v771, %v437
        %v774 = vmul.f32 %v771, %v438
        %v775 = vadd.f32 %v753, %v772
        %v776 = vadd.f32 %v754, %v773
        %v777 = vadd.f32 %v755, %v774
        %v778 = vadd.f32 %v775, %v764
        %v779 = vadd.f32 %v776, %v765
        %v780 = vadd.f32 %v777, %v766
        %784 = vrot.lane.b32.xlu0 %v778, 80
        %v785 = vpop.permute.xlu0 %784
        %786 = vrot.lane.b32.xlu0 %v779, 80
        %v787 = vpop.permute.xlu0 %786
        %788 = vrot.lane.b32.xlu0 %v780, 80
        %v789 = vpop.permute.xlu0 %788
        %vm790 = vcmask 654336
        %v791 = vsel %vm790, %v785, %v787
        %v792 = vsel %vm790, %v787, %v789
        %v795 = vadd.f32 %v699, %v791
        %v796 = vadd.f32 %v700, %v792
        %s797 = sld [smem:[#allocation2 + $0x1c]]
        %s798 = sld [smem:[#allocation2 + $0x4d]]
        %v799 = vstv %s797
        %v800 = vstv %s798
        %v801 = vsel %vm441, %v799, %v800
        %v802 = vmul.f32 %v801, %v275
        %v803 = vmul.f32 %v801, %v276
        %v804 = vmul.f32 %v801, %v277
        %v805 = vadd.f32 %v802, 0.0
        %v806 = vadd.f32 %v803, 0.0
        %v807 = vadd.f32 %v804, 0.0
        %s808 = sld [smem:[#allocation2 + $0x1d]]
        %s809 = sld [smem:[#allocation2 + $0x4e]]
        %v810 = vstv %s808
        %v811 = vstv %s809
        %v812 = vsel %vm441, %v810, %v811
        %v813 = vmul.f32 %v812, %v304
        %v814 = vmul.f32 %v812, %v305
        %v815 = vmul.f32 %v812, %v306
        %v816 = vadd.f32 %v813, 0.0
        %v817 = vadd.f32 %v814, 0.0
        %v818 = vadd.f32 %v815, 0.0
        %s819 = sld [smem:[#allocation2 + $0x1e]]
        %s820 = sld [smem:[#allocation2 + $0x4f]]
        %v821 = vstv %s819
        %v822 = vstv %s820
        %v823 = vsel %vm441, %v821, %v822
        %v824 = vmul.f32 %v823, %v331
        %v825 = vmul.f32 %v823, %v332
        %v826 = vmul.f32 %v823, %v333
        %v827 = vadd.f32 %v805, %v824
        %v828 = vadd.f32 %v806, %v825
        %v829 = vadd.f32 %v807, %v826
        %s830 = sld [smem:[#allocation2 + $0x1f]]
        %s831 = sld [smem:[#allocation2 + $0x50]]
        %v832 = vstv %s830
        %v833 = vstv %s831
        %v834 = vsel %vm441, %v832, %v833
        %v835 = vmul.f32 %v834, %v355
        %v836 = vmul.f32 %v834, %v356
        %v837 = vmul.f32 %v834, %v357
        %v838 = vadd.f32 %v816, %v835
        %v839 = vadd.f32 %v817, %v836
        %v840 = vadd.f32 %v818, %v837
        %s841 = sld [smem:[#allocation2 + $0x20]]
        %s842 = sld [smem:[#allocation2 + $0x51]]
        %v843 = vstv %s841
        %v844 = vstv %s842
        %v845 = vsel %vm441, %v843, %v844
        %v846 = vmul.f32 %v845, %v382
        %v847 = vmul.f32 %v845, %v383
        %v848 = vmul.f32 %v845, %v384
        %v849 = vadd.f32 %v827, %v846
        %v850 = vadd.f32 %v828, %v847
        %v851 = vadd.f32 %v829, %v848
        %s852 = sld [smem:[#allocation2 + $0x21]]
        %s853 = sld [smem:[#allocation2 + $0x52]]
        %v854 = vstv %s852
        %v855 = vstv %s853
        %v856 = vsel %vm441, %v854, %v855
        %v857 = vmul.f32 %v856, %v409
        %v858 = vmul.f32 %v856, %v410
        %v859 = vmul.f32 %v856, %v411
        %v860 = vadd.f32 %v838, %v857
        %v861 = vadd.f32 %v839, %v858
        %v862 = vadd.f32 %v840, %v859
        %s863 = sld [smem:[#allocation2 + $0x22]]
        %s864 = sld [smem:[#allocation2 + $0x53]]
        %v865 = vstv %s863
        %v866 = vstv %s864
        %v867 = vsel %vm441, %v865, %v866
        %v868 = vmul.f32 %v867, %v436
        %v869 = vmul.f32 %v867, %v437
        %v870 = vmul.f32 %v867, %v438
        %v871 = vadd.f32 %v849, %v868
        %v872 = vadd.f32 %v850, %v869
        %v873 = vadd.f32 %v851, %v870
        %v874 = vadd.f32 %v871, %v860
        %v875 = vadd.f32 %v872, %v861
        %v876 = vadd.f32 %v873, %v862
        %880 = vrot.lane.b32.xlu0 %v874, 64
        %v881 = vpop.permute.xlu0 %880
        %882 = vrot.lane.b32.xlu0 %v875, 64
        %v883 = vpop.permute.xlu0 %882
        %884 = vrot.lane.b32.xlu0 %v876, 64
        %v885 = vpop.permute.xlu0 %884
        %vm886 = vcmask 523264
        %v887 = vsel %vm886, %v881, %v883
        %v888 = vsel %vm886, %v883, %v885
        %v891 = vadd.f32 %v795, %v887
        %v892 = vadd.f32 %v796, %v888
        %s893 = sld [smem:[#allocation2 + $0x23]]
        %s894 = sld [smem:[#allocation2 + $0x54]]
        %v895 = vstv %s893
        %v896 = vstv %s894
        %v897 = vsel %vm441, %v895, %v896
        %v898 = vmul.f32 %v897, %v275
        %v899 = vmul.f32 %v897, %v276
        %v900 = vmul.f32 %v897, %v277
        %v901 = vadd.f32 %v898, 0.0
        %v902 = vadd.f32 %v899, 0.0
        %v903 = vadd.f32 %v900, 0.0
        %s904 = sld [smem:[#allocation2 + $0x24]]
        %s905 = sld [smem:[#allocation2 + $0x55]]
        %v906 = vstv %s904
        %v907 = vstv %s905
        %v908 = vsel %vm441, %v906, %v907
        %v909 = vmul.f32 %v908, %v304
        %v910 = vmul.f32 %v908, %v305
        %v911 = vmul.f32 %v908, %v306
        %v912 = vadd.f32 %v909, 0.0
        %v913 = vadd.f32 %v910, 0.0
        %v914 = vadd.f32 %v911, 0.0
        %s915 = sld [smem:[#allocation2 + $0x25]]
        %s916 = sld [smem:[#allocation2 + $0x56]]
        %v917 = vstv %s915
        %v918 = vstv %s916
        %v919 = vsel %vm441, %v917, %v918
        %v920 = vmul.f32 %v919, %v331
        %v921 = vmul.f32 %v919, %v332
        %v922 = vmul.f32 %v919, %v333
        %v923 = vadd.f32 %v901, %v920
        %v924 = vadd.f32 %v902, %v921
        %v925 = vadd.f32 %v903, %v922
        %s926 = sld [smem:[#allocation2 + $0x26]]
        %s927 = sld [smem:[#allocation2 + $0x57]]
        %v928 = vstv %s926
        %v929 = vstv %s927
        %v930 = vsel %vm441, %v928, %v929
        %v931 = vmul.f32 %v930, %v355
        %v932 = vmul.f32 %v930, %v356
        %v933 = vmul.f32 %v930, %v357
        %v934 = vadd.f32 %v912, %v931
        %v935 = vadd.f32 %v913, %v932
        %v936 = vadd.f32 %v914, %v933
        %s937 = sld [smem:[#allocation2 + $0x27]]
        %s938 = sld [smem:[#allocation2 + $0x58]]
        %v939 = vstv %s937
        %v940 = vstv %s938
        %v941 = vsel %vm441, %v939, %v940
        %v942 = vmul.f32 %v941, %v382
        %v943 = vmul.f32 %v941, %v383
        %v944 = vmul.f32 %v941, %v384
        %v945 = vadd.f32 %v923, %v942
        %v946 = vadd.f32 %v924, %v943
        %v947 = vadd.f32 %v925, %v944
        %s948 = sld [smem:[#allocation2 + $0x28]]
        %s949 = sld [smem:[#allocation2 + $0x59]]
        %v950 = vstv %s948
        %v951 = vstv %s949
        %v952 = vsel %vm441, %v950, %v951
        %v953 = vmul.f32 %v952, %v409
        %v954 = vmul.f32 %v952, %v410
        %v955 = vmul.f32 %v952, %v411
        %v956 = vadd.f32 %v934, %v953
        %v957 = vadd.f32 %v935, %v954
        %v958 = vadd.f32 %v936, %v955
        %s959 = sld [smem:[#allocation2 + $0x29]]
        %s960 = sld [smem:[#allocation2 + $0x5a]]
        %v961 = vstv %s959
        %v962 = vstv %s960
        %v963 = vsel %vm441, %v961, %v962
        %v964 = vmul.f32 %v963, %v436
        %v965 = vmul.f32 %v963, %v437
        %v966 = vmul.f32 %v963, %v438
        %v967 = vadd.f32 %v945, %v964
        %v968 = vadd.f32 %v946, %v965
        %v969 = vadd.f32 %v947, %v966
        %v970 = vadd.f32 %v967, %v956
        %v971 = vadd.f32 %v968, %v957
        %v972 = vadd.f32 %v969, %v958
        %976 = vrot.lane.b32.xlu0 %v970, 48
        %v977 = vpop.permute.xlu0 %976
        %978 = vrot.lane.b32.xlu0 %v971, 48
        %v979 = vpop.permute.xlu0 %978
        %980 = vrot.lane.b32.xlu0 %v972, 48
        %v981 = vpop.permute.xlu0 %980
        %vm982 = vcmask 392192
        %v983 = vsel %vm982, %v977, %v979
        %v984 = vsel %vm982, %v979, %v981
        %v987 = vadd.f32 %v891, %v983
        %v988 = vadd.f32 %v892, %v984
        %s989 = sld [smem:[#allocation2 + $0x2a]]
        %s990 = sld [smem:[#allocation2 + $0x5b]]
        %v991 = vstv %s989
        %v992 = vstv %s990
        %v993 = vsel %vm441, %v991, %v992
        %v994 = vmul.f32 %v993, %v275
        %v995 = vmul.f32 %v993, %v276
        %v996 = vmul.f32 %v993, %v277
        %v997 = vadd.f32 %v994, 0.0
        %v998 = vadd.f32 %v995, 0.0
        %v999 = vadd.f32 %v996, 0.0
        %s1000 = sld [smem:[#allocation2 + $0x2b]]
        %s1001 = sld [smem:[#allocation2 + $0x5c]]
        %v1002 = vstv %s1000
        %v1003 = vstv %s1001
        %v1004 = vsel %vm441, %v1002, %v1003
        %v1005 = vmul.f32 %v1004, %v304
        %v1006 = vmul.f32 %v1004, %v305
        %v1007 = vmul.f32 %v1004, %v306
        %v1008 = vadd.f32 %v1005, 0.0
        %v1009 = vadd.f32 %v1006, 0.0
        %v1010 = vadd.f32 %v1007, 0.0
        %s1011 = sld [smem:[#allocation2 + $0x2c]]
        %s1012 = sld [smem:[#allocation2 + $0x5d]]
        %v1013 = vstv %s1011
        %v1014 = vstv %s1012
        %v1015 = vsel %vm441, %v1013, %v1014
        %v1016 = vmul.f32 %v1015, %v331
        %v1017 = vmul.f32 %v1015, %v332
        %v1018 = vmul.f32 %v1015, %v333
        %v1019 = vadd.f32 %v997, %v1016
        %v1020 = vadd.f32 %v998, %v1017
        %v1021 = vadd.f32 %v999, %v1018
        %s1022 = sld [smem:[#allocation2 + $0x2d]]
        %s1023 = sld [smem:[#allocation2 + $0x5e]]
        %v1024 = vstv %s1022
        %v1025 = vstv %s1023
        %v1026 = vsel %vm441, %v1024, %v1025
        %v1027 = vmul.f32 %v1026, %v355
        %v1028 = vmul.f32 %v1026, %v356
        %v1029 = vmul.f32 %v1026, %v357
        %v1030 = vadd.f32 %v1008, %v1027
        %v1031 = vadd.f32 %v1009, %v1028
        %v1032 = vadd.f32 %v1010, %v1029
        %s1033 = sld [smem:[#allocation2 + $0x2e]]
        %s1034 = sld [smem:[#allocation2 + $0x5f]]
        %v1035 = vstv %s1033
        %v1036 = vstv %s1034
        %v1037 = vsel %vm441, %v1035, %v1036
        %v1038 = vmul.f32 %v1037, %v382
        %v1039 = vmul.f32 %v1037, %v383
        %v1040 = vmul.f32 %v1037, %v384
        %v1041 = vadd.f32 %v1019, %v1038
        %v1042 = vadd.f32 %v1020, %v1039
        %v1043 = vadd.f32 %v1021, %v1040
        %s1044 = sld [smem:[#allocation2 + $0x2f]]
        %s1045 = sld [smem:[#allocation2 + $0x60]]
        %v1046 = vstv %s1044
        %v1047 = vstv %s1045
        %v1048 = vsel %vm441, %v1046, %v1047
        %v1049 = vmul.f32 %v1048, %v409
        %v1050 = vmul.f32 %v1048, %v410
        %v1051 = vmul.f32 %v1048, %v411
        %v1052 = vadd.f32 %v1030, %v1049
        %v1053 = vadd.f32 %v1031, %v1050
        %v1054 = vadd.f32 %v1032, %v1051
        %s1055 = sld [smem:[#allocation2 + $0x30]]
        %s1056 = sld [smem:[#allocation2 + $0x61]]
        %v1057 = vstv %s1055
        %v1058 = vstv %s1056
        %v1059 = vsel %vm441, %v1057, %v1058
        %v1060 = vmul.f32 %v1059, %v436
        %v1061 = vmul.f32 %v1059, %v437
        %v1062 = vmul.f32 %v1059, %v438
        %v1063 = vadd.f32 %v1041, %v1060
        %v1064 = vadd.f32 %v1042, %v1061
        %v1065 = vadd.f32 %v1043, %v1062
        %v1066 = vadd.f32 %v1063, %v1052
        %v1067 = vadd.f32 %v1064, %v1053
        %v1068 = vadd.f32 %v1065, %v1054
        %1072 = vrot.lane.b32.xlu0 %v1066, 32
        %v1073 = vpop.permute.xlu0 %1072
        %1074 = vrot.lane.b32.xlu0 %v1067, 32
        %v1075 = vpop.permute.xlu0 %1074
        %1076 = vrot.lane.b32.xlu0 %v1068, 32
        %v1077 = vpop.permute.xlu0 %1076
        %vm1078 = vcmask 261120
        %v1079 = vsel %vm1078, %v1073, %v1075
        %v1080 = vsel %vm1078, %v1075, %v1077
        %v1083 = vadd.f32 %v987, %v1079
        %v1084 = vadd.f32 %v988, %v1080
        %v1087 = vrot.slane %v1083, 1
        %v1088 = vrot.slane %v1084, 1
        %v1091 = vadd.f32 %v1083, %v1087
        %v1092 = vadd.f32 %v1084, %v1088
        %v1093 = vxor.u32 %v1091, 2147483648
        %v1094 = vxor.u32 %v1092, 2147483648
        %v1095 = vmul.f32 %v1093, 1.442695
        %v1096 = vpow.pop %v1095
        %v1097 = vmul.f32 %v1094, 1.442695
        %v1098 = vpow.pop %v1097
        %v1099 = vadd.f32 %v1096, 1.0
        %v1100 = vadd.f32 %v1098, 1.0
        %v1101 = vrcp.pop %v1099
        %v1102 = vmul.f32 1.0, %v1101
        %v1103 = vrcp.pop %v1100
        %v1104 = vmul.f32 1.0, %v1103
        %v1105 = vlaneseq
        %v1106 = vshrl.u32 %v1105, 7
        %v1107 = vsub.s32 0, %v1106
        %v1108 = vrot.slane %v1102, %v1107
        %v1109 = vlaneseq
        %v1110 = vshrl.u32 %v1109, 7
        %v1111 = vsub.s32 0, %v1110
        %v1112 = vrot.slane %v1104, %v1111
        %v1115 = vcombine.low %v1108, %v1112
        %v1117 = vmul.f32 %v172, %v1115
        %1118 = vst [vmem:[%s171] sm:$0xff] %v1117
        %s1119 = sand.u32 %s75, 1
        %s1120 = scalar_lea.sflag [#allocation4], %s1119
        %s1121 = sand.u32 %s75, 1
        %s1122 = smul.addr %s1121, 8
        %s1123 = scalar_lea.vmem [#allocation7], %s1122
        // Predicated region
        $region37: #{tpu_custom_call.1} parent=27 // pred_check
          %p1124 = pneg %p85
        $region38: #{tpu_custom_call.1} parent=27 // pred_check_branch
          %1126 = sbr.rel (%p1124) target = $region40
        $region39: #{tpu_custom_call.1} parent=27 // pred_region
          %s1128 = ssub.s32 128, 128
          %1129 = vsyncadd %s1120, %s1128
          %s1130 = smul.addr %s20, 2
          %s1131 = smul.addr %s1130, 64
          %s1132 = scalar_lea.hbm %s2, %s1131
          %s1134 = sshll.u32 %s1123, 4
          %s1135 = int_to_ptr.vmem [resolvable:$true] %s1134
          %1137 = dma.vmem_to_hbm [thread:$0]  %s1135, 128, %s1132, %s1120
        $region40: #{tpu_custom_call.1} parent=27 // pred_fallthru
          _
      $region28: #{tpu_custom_call.1} parent=5 // pred_fallthru
        _
      %p1138 = scmp.le.s32.totalorder 2, %s15
      // Predicated region
      $region41: #{tpu_custom_call.1} parent=5 // pred_check
        %p1139 = pneg %p1138
      $region42: #{tpu_custom_call.1} parent=5 // pred_check_branch
        %1141 = sbr.rel (%p1139) target = $region44
      $region43: #{tpu_custom_call.1} parent=5 // pred_region
        %s1142 = ssub.s32 %s15, 2
        // Predicated region
        $region45: #{tpu_custom_call.1} parent=43 // pred_check
          %p1143 = pneg %p91
        $region46: #{tpu_custom_call.1} parent=43 // pred_check_branch
          %1145 = sbr.rel (%p1143) target = $region48
        $region47: #{tpu_custom_call.1} parent=43 // pred_region
          %s1146 = sand.u32 %s76, 1
          %s1147 = scalar_lea.sflag [#allocation4], %s1146
          %s1148 = sand.u32 %s76, 1
          %s1149 = smul.addr %s1148, 8
          %s1150 = scalar_lea.vmem [#allocation7], %s1149
          %1151 = dma.done %s1147, 128
        $region48: #{tpu_custom_call.1} parent=43 // pred_fallthru
          _
      $region44: #{tpu_custom_call.1} parent=5 // pred_fallthru
        _
    $region6: #{tpu_custom_call.1} parent=1 // loop_footer
      %s19 = sadd.s32 1, %s15
    $region7: #{tpu_custom_call.1} parent=1 // loop_footer_branch
      %14 = sbr.rel target = $region3
    $region8: #{tpu_custom_call.1} parent=1 // loop_exit
      _
    %1152 = vsyncpa [#allocation3], 1
    %s1153 = scalar_lea.sflag [#allocation3], 1
    %1154 = vsyncpa %s1153, 1
    %1155 = vsyncpa [#allocation4], 1
    %s1156 = scalar_lea.sflag [#allocation4], 1
    %1157 = vsyncpa %s1156, 1
    %1158 = vsyncpa [#allocation5], 1
    %s1159 = scalar_lea.sflag [#allocation5], 1
    %1160 = vsyncpa %s1159, 1

</llo_original>
